<compile_context>
chip_gen: v7x
topology: tpu7x:2x2x1
jax: 0.10.0
libtpu: 0.0.40
codegen_flags: <defaults>
</compile_context>

<pallas_src>
import functools

import jax
import jax.numpy as jnp
from jax.experimental import pallas as pl
from jax.experimental.pallas import tpu as pltpu


# Row indices of the packed (L, 9, D) small-parameter array.
_LN1_G, _LN1_B, _BQ, _BK, _BV, _BO, _LN2_G, _LN2_B, _B2 = range(9)


# ---------------------------------------------------------------------------
# Fused multi-layer transformer kernel.  grid = (batch_blocks, L); the hidden
# state is carried across the (inner, "arbitrary") layer axis in VMEM scratch.
# ---------------------------------------------------------------------------
def _fused_blocks_kernel(x_ref, sp_ref, b1_ref, wqkv_ref, wo_ref, w1_ref, w2_ref,
                         *outs_and_scratch, num_heads, collect_hiddens):
    if collect_hiddens:
        out_ref, hiddens_ref, carry_ref = outs_and_scratch
    else:
        out_ref, carry_ref = outs_and_scratch
        hiddens_ref = None

    layer = pl.program_id(1)
    n_layers = pl.num_programs(1)
    f32, bf16 = jnp.float32, jnp.bfloat16

    # Initialise the carried residual stream from the kernel input on layer 0.
    @pl.when(layer == 0)
    def _():
        carry_ref[...] = x_ref[...].astype(f32)

    x = carry_ref[...]                          # (Bb, S, D) float32
    Bb, S, D = x.shape
    H = num_heads
    dh = D // H
    M = Bb * S

    if hiddens_ref is not None:
        # Pre-layer hidden state, stacked along the layer axis ([L, B, S, D]).
        # TODO(synk): a bf16 hiddens writeback would halve this HBM store traffic.
        hiddens_ref[0] = x.astype(hiddens_ref.dtype)

    sp = sp_ref[0]                              # (9, D) packed LN/bias params

    def layernorm(h, g_row, b_row):
        mu = jnp.mean(h, axis=-1, keepdims=True)
        var = jnp.mean(jnp.square(h - mu), axis=-1, keepdims=True)
        return ((h - mu) * jax.lax.rsqrt(var + 1e-5)
                * sp[g_row:g_row + 1, :] + sp[b_row:b_row + 1, :])

    # ---- attention sub-block ------------------------------------------------
    # TODO(synk): attention masks / extra batch_related args are not applied.
    h1 = layernorm(x, _LN1_G, _LN1_B).astype(bf16).reshape(M, D)

    # Single full-width QKV GEMM (1/sqrt(dh) pre-folded into the Q columns).
    qkv = jnp.dot(h1, wqkv_ref[0], preferred_element_type=f32)      # (M, 3D)
    q = (qkv[:, :D] + sp[_BQ:_BQ + 1, :]).reshape(Bb, S, D)
    k = (qkv[:, D:2 * D] + sp[_BK:_BK + 1, :]).reshape(Bb, S, D)
    v = (qkv[:, 2 * D:] + sp[_BV:_BV + 1, :]).reshape(Bb, S, D)

    # Per-head attention core (batched over the Bb leading dim, no transposes).
    # TODO(synk): for production S use flash-style KV tiling + bf16 exp on v6e/v7x.
    ctx_heads = []
    for h in range(H):
        sl = slice(h * dh, (h + 1) * dh)
        qh = q[:, :, sl].astype(bf16)
        kh = k[:, :, sl].astype(bf16)
        vh = v[:, :, sl].astype(bf16)
        s = jnp.einsum('bqd,bkd->bqk', qh, kh,
                       preferred_element_type=f32)                  # (Bb, S, S)
        m = jnp.max(s, axis=-1, keepdims=True)
        p = jnp.exp(s - m)
        p = p * pl.reciprocal(jnp.sum(p, axis=-1, keepdims=True), approx=True)
        ctx_heads.append(jnp.einsum('bqk,bkd->bqd', p.astype(bf16), vh,
                                    preferred_element_type=f32).astype(bf16))
    ctx = ctx_heads[0] if H == 1 else jnp.concatenate(ctx_heads, axis=-1)
    ctx = ctx.reshape(M, D)                                         # (M, D) bf16

    # Single output projection with K = D (contracts heads and head-dim together).
    attn = jnp.dot(ctx, wo_ref[0], preferred_element_type=f32) + sp[_BO:_BO + 1, :]
    x = x + attn.reshape(Bb, S, D)

    # ---- MLP sub-block -------------------------------------------------------
    h2 = layernorm(x, _LN2_G, _LN2_B).astype(bf16).reshape(M, D)
    ff = jnp.dot(h2, w1_ref[0], preferred_element_type=f32) + b1_ref[0]
    # TODO(synk): PyTorch nn.GELU default is the exact erf form; tanh approx used.
    ff = jax.nn.gelu(ff, approximate=True).astype(bf16)
    ff = jnp.dot(ff, w2_ref[0], preferred_element_type=f32) + sp[_B2:_B2 + 1, :]
    new_x = x + ff.reshape(Bb, S, D)

    carry_ref[...] = new_x

    @pl.when(layer == n_layers - 1)
    def _():
        out_ref[...] = new_x.astype(out_ref.dtype)


# ---------------------------------------------------------------------------
# Wrapper: one pallas_call over all layers.
# ---------------------------------------------------------------------------
@functools.partial(jax.jit,
                   static_argnames=("num_heads", "return_hidden_states", "batch_blocks"))
def transformer_blocks_forward(hidden, stacked, *, num_heads,
                               return_hidden_states, batch_blocks=1):
    B, S, D = hidden.shape
    L = stacked["wqkv"].shape[0]
    F = stacked["w1"].shape[-1]
    H = num_heads
    assert D % H == 0
    assert B % batch_blocks == 0
    bblk = B // batch_blocks

    kernel = functools.partial(_fused_blocks_kernel, num_heads=num_heads,
                               collect_hiddens=return_hidden_states)

    def wspec(shape):
        nd = len(shape)
        return pl.BlockSpec((1,) + shape, lambda nb, l, _n=nd: (l,) + (0,) * _n)

    in_specs = [
        pl.BlockSpec((bblk, S, D), lambda nb, l: (nb, 0, 0)),   # hidden state
        wspec((9, D)),            # packed LN gammas/betas + attention/output biases
        wspec((1, F)),            # b1
        wspec((D, 3 * D)),        # fused Wqkv (Q columns pre-scaled)
        wspec((D, D)),            # Wo
        wspec((D, F)),            # W1
        wspec((F, D)),            # W2
    ]

    out_shape = [jax.ShapeDtypeStruct((B, S, D), hidden.dtype)]
    out_specs = [pl.BlockSpec((bblk, S, D), lambda nb, l: (nb, 0, 0))]
    if return_hidden_states:
        out_shape.append(jax.ShapeDtypeStruct((L, B, S, D), hidden.dtype))
        out_specs.append(pl.BlockSpec((1, bblk, S, D), lambda nb, l: (l, nb, 0, 0)))

    # Roofline hints + VMEM budget derived from the actual part's capacity.
    weight_bytes = (3 * D * D + D * D + 2 * D * F) * 2          # bf16 weights / layer
    small_bytes = (9 * D + F) * 4
    M = bblk * S
    per_layer_flops = 2 * M * D * (4 * D + 2 * F) + 4 * bblk * S * S * D
    per_layer_transc = bblk * H * S * S + M * F + 4 * M
    cost = pl.CostEstimate(
        flops=int(per_layer_flops) * L * batch_blocks,
        transcendentals=int(per_layer_transc) * L * batch_blocks,
        bytes_accessed=int(weight_bytes + small_bytes) * L * batch_blocks
        + B * S * D * 4 * (2 + (L if return_hidden_states else 0)))

    act_bytes = (10 * M * D + 3 * M * D + 2 * M * F + bblk * H * S * S) * 4
    vmem_need = 2 * (weight_bytes + small_bytes) + 3 * M * D * 4 + act_bytes
    try:
        phys_vmem = int(pltpu.get_tpu_info().vmem_capacity_bytes)
    except Exception:  # pragma: no cover - conservative fallback
        phys_vmem = 64 * 1024 * 1024
    vmem_limit = int(min(max(2 * vmem_need, 32 * 1024 * 1024), int(phys_vmem * 0.9)))
    # TODO(synk): if vmem_need exceeds the limit (production shapes on v7x),
    # switch to F-tiled MLP and KV-tiled attention instead of clamping.

    results = pl.pallas_call(
        kernel,
        out_shape=tuple(out_shape),
        grid_spec=pltpu.PrefetchScalarGridSpec(
            num_scalar_prefetch=0,
            grid=(batch_blocks, L),          # layer axis innermost (carried state)
            in_specs=in_specs,
            out_specs=tuple(out_specs),
            scratch_shapes=[pltpu.VMEM((bblk, S, D), jnp.float32)]),
        compiler_params=pltpu.CompilerParams(
            dimension_semantics=("parallel", "arbitrary"),
            vmem_limit_bytes=vmem_limit),
        cost_estimate=cost,
    )(hidden, stacked["small"], stacked["b1"], stacked["wqkv"],
      stacked["wo"], stacked["w1"], stacked["w2"])

    if return_hidden_states:
        return results[0], results[1]
    return results[0]


# ---------------------------------------------------------------------------
# PipelineTransformerBlockList (single-device pipeline topology)
# ---------------------------------------------------------------------------
class PipelineTransformerBlockList:
    """JAX/Pallas port of bmtrain.pipe_layer.PipelineTransformerBlockList.

    Single-device topology: pipe_size == 1, pipe_rank == 0, micros == 1, so
    PipePreFunction / StagePreFunction / StagePostFunction / PipePostFunction
    all reduce to identities and forward == sequential application of blocks.

    batch_blocks: split the batch over a leading "parallel" grid axis; use 2
    on v7x so both TensorCores are busy (weights are then streamed twice).
    """
    # TODO(synk): multi-device pipeline comm (send/recv/broadcast/all_gather via
    # pltpu.make_async_remote_copy + semaphores) is not emulated here.
    # TODO(synk): int8 weight quantization would halve HBM traffic on v5e/v6e.

    def __init__(self, layer_params, num_heads, num_hidden=1, batch_blocks=1):
        self.num_heads = num_heads
        self.num_hidden = num_hidden
        self.batch_blocks = batch_blocks
        self.pipe_size = 1
        self.pipe_rank = 0
        layer_params = list(layer_params)
        self._num_layers = len(layer_params)
        self.layer_ids = list(range(self._num_layers))

        D = layer_params[0]["wq"].shape[0]
        F = layer_params[0]["w1"].shape[1]
        H = num_heads
        assert D % H == 0, "hidden dim must be divisible by num_heads"
        dh = D // H
        scale = 1.0 / float(dh) ** 0.5
        bf16 = jnp.bfloat16

        def stack(name):
            return jnp.stack([p[name] for p in layer_params], axis=0)

        # Fused QKV weight (L, D, 3D); 1/sqrt(dh) folded into the Q columns and bq.
        wqkv = jnp.concatenate([stack("wq") * scale, stack("wk"), stack("wv")],
                               axis=-1).astype(bf16)
        # All small per-layer vectors packed into one (L, 9, D) lane-dense block.
        small = jnp.stack([
            stack("ln1_g"), stack("ln1_b"),
            stack("bq") * scale, stack("bk"), stack("bv"),
            stack("bo"), stack("ln2_g"), stack("ln2_b"), stack("b2"),
        ], axis=1).astype(jnp.float32)

        self.stacked = {
            "small": small,                                      # (L, 9, D)
            "b1": stack("b1").reshape(-1, 1, F).astype(jnp.float32),
            "wqkv": wqkv,                                        # (L, D, 3D) bf16
            "wo": stack("wo").astype(bf16),                      # (L, D, D)  bf16
            "w1": stack("w1").astype(bf16),                      # (L, D, F)  bf16
            "w2": stack("w2").astype(bf16),                      # (L, F, D)  bf16
        }

    def __len__(self):
        return self._num_layers

    def __call__(self, hidden_state, *args, batch_related=(), return_hidden_states=False):
        # pipe_size == 1, micros == 1: all_gather / broadcast / chunk+cat are identities.
        # TODO(synk): extra per-layer args from *args / batch_related are accepted but
        # not threaded into the fused kernel (no mask support).
        return transformer_blocks_forward(
            hidden_state, self.stacked,
            num_heads=self.num_heads,
            return_hidden_states=return_hidden_states,
            batch_blocks=self.batch_blocks)


# ---------------------------------------------------------------------------
# Deterministic parameter init + pure-JAX reference (for a sanity check)
# ---------------------------------------------------------------------------
def init_layer_params(key, hidden, ffn):
    ks = jax.random.split(key, 6)
    s = 0.02
    f32 = jnp.float32
    return {
        "ln1_g": jnp.ones((hidden,), f32),
        "ln1_b": jnp.zeros((hidden,), f32),
        "wq": (s * jax.random.normal(ks[0], (hidden, hidden))).astype(f32),
        "wk": (s * jax.random.normal(ks[1], (hidden, hidden))).astype(f32),
        "wv": (s * jax.random.normal(ks[2], (hidden, hidden))).astype(f32),
        "bq": jnp.zeros((hidden,), f32),
        "bk": jnp.zeros((hidden,), f32),
        "bv": jnp.zeros((hidden,), f32),
        "wo": (s * jax.random.normal(ks[3], (hidden, hidden))).astype(f32),
        "bo": jnp.zeros((hidden,), f32),
        "ln2_g": jnp.ones((hidden,), f32),
        "ln2_b": jnp.zeros((hidden,), f32),
        "w1": (s * jax.random.normal(ks[4], (hidden, ffn))).astype(f32),
        "b1": jnp.zeros((ffn,), f32),
        "w2": (s * jax.random.normal(ks[5], (ffn, hidden))).astype(f32),
        "b2": jnp.zeros((hidden,), f32),
    }


def _reference_forward(x, layer_params, num_heads):
    def ln(h, g, b):
        mu = jnp.mean(h, axis=-1, keepdims=True)
        var = jnp.mean(jnp.square(h - mu), axis=-1, keepdims=True)
        return (h - mu) * jax.lax.rsqrt(var + 1e-5) * g + b

    H = num_heads
    B, S, D = x.shape
    dh = D // H
    hiddens = []
    for p in layer_params:
        hiddens.append(x)
        h1 = ln(x, p["ln1_g"], p["ln1_b"])
        q = (h1 @ p["wq"] + p["bq"]).reshape(B, S, H, dh).transpose(0, 2, 1, 3)
        k = (h1 @ p["wk"] + p["bk"]).reshape(B, S, H, dh).transpose(0, 2, 1, 3)
        v = (h1 @ p["wv"] + p["bv"]).reshape(B, S, H, dh).transpose(0, 2, 1, 3)
        s = jnp.einsum('bhqd,bhkd->bhqk', q, k) / jnp.sqrt(dh)
        w = jax.nn.softmax(s, axis=-1)
        ctx = jnp.einsum('bhqk,bhkd->bhqd', w, v).transpose(0, 2, 1, 3).reshape(B, S, D)
        x = x + ctx @ p["wo"] + p["bo"]
        h2 = ln(x, p["ln2_g"], p["ln2_b"])
        ff = jax.nn.gelu(h2 @ p["w1"] + p["b1"], approximate=True)
        x = x + ff @ p["w2"] + p["b2"]
    return x, jnp.stack(hiddens, axis=0)


if __name__ == "__main__":
    B, S, D, F = 2, 8, 32, 64
    NUM_LAYERS, NUM_HEADS = 4, 2

    key = jax.random.PRNGKey(0)
    key, xkey = jax.random.split(key)
    layer_keys = jax.random.split(key, NUM_LAYERS)

    params = [init_layer_params(k, D, F) for k in layer_keys]
    block_list = PipelineTransformerBlockList(params, num_heads=NUM_HEADS)

    x = jax.random.normal(xkey, (B, S, D), dtype=jnp.float32)

    out, hiddens = block_list(x, return_hidden_states=True)
    out = jax.block_until_ready(out)
    hiddens = jax.block_until_ready(hiddens)

    assert out.shape == (B, S, D)
    assert hiddens.shape == (NUM_LAYERS, B, S, D)
    assert bool(jnp.all(jnp.isfinite(out)))

    out_only = jax.block_until_ready(block_list(x))
    assert out_only.shape == (B, S, D)

    ref_out, ref_hiddens = _reference_forward(x, params, NUM_HEADS)
    assert jnp.allclose(out, ref_out, atol=5e-2, rtol=5e-2), \
        float(jnp.max(jnp.abs(out - ref_out)))
    assert jnp.allclose(hiddens, ref_hiddens, atol=5e-2, rtol=5e-2)

    # v7x-style megacore path: batch split over a leading "parallel" grid axis.
    block_list_mc = PipelineTransformerBlockList(params, num_heads=NUM_HEADS,
                                                 batch_blocks=2)
    out_mc = jax.block_until_ready(block_list_mc(x))
    assert jnp.allclose(out_mc, ref_out, atol=5e-2, rtol=5e-2)

    print("KERNEL_OK")
</pallas_src>

<mosaic_0001>
module attributes {stable_mosaic.version = 11 : i64} {
  func.func @_fused_blocks_kernel(%arg0: i32, %arg1: i32, %arg2: memref<2x8x32xf32, #tpu.memory_space<vmem>>, %arg3: memref<1x9x32xf32, #tpu.memory_space<vmem>>, %arg4: memref<1x1x64xf32, #tpu.memory_space<vmem>>, %arg5: memref<1x32x96xbf16, #tpu.memory_space<vmem>>, %arg6: memref<1x32x32xbf16, #tpu.memory_space<vmem>>, %arg7: memref<1x32x64xbf16, #tpu.memory_space<vmem>>, %arg8: memref<1x64x32xbf16, #tpu.memory_space<vmem>>, %arg9: memref<2x8x32xf32, #tpu.memory_space<vmem>>, %arg10: memref<1x2x8x32xf32, #tpu.memory_space<vmem>>, %arg11: memref<2x8x32xf32, #tpu.memory_space<vmem>>) attributes {dimension_semantics = [#tpu.dimension_semantics<parallel>, #tpu.dimension_semantics<arbitrary>], iteration_bounds = array<i64: 1, 4>, scalar_prefetch = 0 : i64, scratch_operands = 1 : i64, tpu.core_type = #tpu.core_type<tc>, window_params = [{transform_indices = @transform_0, window_bounds = array<i64: 2, 8, 32>}, {transform_indices = @transform_1, window_bounds = array<i64: 1, 9, 32>}, {transform_indices = @transform_2, window_bounds = array<i64: 1, 1, 64>}, {transform_indices = @transform_3, window_bounds = array<i64: 1, 32, 96>}, {transform_indices = @transform_4, window_bounds = array<i64: 1, 32, 32>}, {transform_indices = @transform_5, window_bounds = array<i64: 1, 32, 64>}, {transform_indices = @transform_6, window_bounds = array<i64: 1, 64, 32>}, {transform_indices = @transform_7, window_bounds = array<i64: 2, 8, 32>}, {transform_indices = @transform_8, window_bounds = array<i64: 1, 2, 8, 32>}]} {
    %c0_i32 = arith.constant 0 : i32
    %0 = arith.cmpi eq, %arg1, %c0_i32 : i32
    %1 = arith.extui %0 : i1 to i32
    %c0_i32_0 = arith.constant 0 : i32
    %2 = arith.cmpi ne, %1, %c0_i32_0 : i32
    scf.if %2 {
      %c0_54 = arith.constant 0 : index
      %c0_55 = arith.constant 0 : index
      %c0_56 = arith.constant 0 : index
      %166 = vector.load %arg2[%c0_54, %c0_55, %c0_56] : memref<2x8x32xf32, #tpu.memory_space<vmem>>, vector<2x8x32xf32>
      %c0_57 = arith.constant 0 : index
      %c0_58 = arith.constant 0 : index
      %c0_59 = arith.constant 0 : index
      %167 = vector.load %arg11[%c0_57, %c0_58, %c0_59] : memref<2x8x32xf32, #tpu.memory_space<vmem>>, vector<2x8x32xf32>
      tpu.vector_store %arg11[%c0_57, %c0_58, %c0_59], %166 {strides = array<i32>} : memref<2x8x32xf32, #tpu.memory_space<vmem>>, vector<2x8x32xf32>,
    } else {
    }
    %c0 = arith.constant 0 : index
    %c0_1 = arith.constant 0 : index
    %c0_2 = arith.constant 0 : index
    %3 = vector.load %arg11[%c0, %c0_1, %c0_2] : memref<2x8x32xf32, #tpu.memory_space<vmem>>, vector<2x8x32xf32>
    %c0_3 = arith.constant 0 : index
    %c0_4 = arith.constant 0 : index
    %c0_5 = arith.constant 0 : index
    %c0_6 = arith.constant 0 : index
    %4 = vector.load %arg10[%c0_3, %c0_4, %c0_5, %c0_6] : memref<1x2x8x32xf32, #tpu.memory_space<vmem>>, vector<1x2x8x32xf32>
    %5 = vector.shape_cast %4 : vector<1x2x8x32xf32> to vector<2x8x32xf32>
    %6 = vector.shape_cast %3 : vector<2x8x32xf32> to vector<1x2x8x32xf32>
    tpu.vector_store %arg10[%c0_3, %c0_4, %c0_5, %c0_6], %6 {strides = array<i32>} : memref<1x2x8x32xf32, #tpu.memory_space<vmem>>, vector<1x2x8x32xf32>,
    %c0_7 = arith.constant 0 : index
    %c0_8 = arith.constant 0 : index
    %c0_9 = arith.constant 0 : index
    %7 = vector.load %arg3[%c0_7, %c0_8, %c0_9] : memref<1x9x32xf32, #tpu.memory_space<vmem>>, vector<1x9x32xf32>
    %8 = vector.shape_cast %7 : vector<1x9x32xf32> to vector<9x32xf32>
    %cst = arith.constant dense<0.000000e+00> : vector<2x8xf32>
    %9 = vector.multi_reduction <add>, %3, %cst [2] : vector<2x8x32xf32> to vector<2x8xf32>
    %10 = vector.shape_cast %9 : vector<2x8xf32> to vector<2x8x1xf32>
    %cst_10 = arith.constant 3.200000e+01 : f32
    %11 = vector.broadcast %cst_10 : f32 to vector<2x8x1xf32>
    %12 = arith.divf %10, %11 : vector<2x8x1xf32>
    %13 = vector.broadcast %12 : vector<2x8x1xf32> to vector<2x8x32xf32>
    %14 = arith.subf %3, %13 : vector<2x8x32xf32>
    %15 = arith.mulf %14, %14 : vector<2x8x32xf32>
    %cst_11 = arith.constant dense<0.000000e+00> : vector<2x8xf32>
    %16 = vector.multi_reduction <add>, %15, %cst_11 [2] : vector<2x8x32xf32> to vector<2x8xf32>
    %17 = vector.shape_cast %16 : vector<2x8xf32> to vector<2x8x1xf32>
    %cst_12 = arith.constant 3.200000e+01 : f32
    %18 = vector.broadcast %cst_12 : f32 to vector<2x8x1xf32>
    %19 = arith.divf %17, %18 : vector<2x8x1xf32>
    %20 = vector.broadcast %12 : vector<2x8x1xf32> to vector<2x8x32xf32>
    %21 = arith.subf %3, %20 : vector<2x8x32xf32>
    %cst_13 = arith.constant 9.99999974E-6 : f32
    %22 = vector.broadcast %cst_13 : f32 to vector<2x8x1xf32>
    %23 = arith.addf %19, %22 : vector<2x8x1xf32>
    %24 = math.rsqrt %23 : vector<2x8x1xf32>
    %25 = vector.broadcast %24 : vector<2x8x1xf32> to vector<2x8x32xf32>
    %26 = arith.mulf %21, %25 : vector<2x8x32xf32>
    %27 = vector.extract_strided_slice %8 {offsets = [0, 0], sizes = [1, 32], strides = [1, 1]} : vector<9x32xf32> to vector<1x32xf32>
    %28 = vector.shape_cast %27 : vector<1x32xf32> to vector<1x1x32xf32>
    %29 = vector.broadcast %28 : vector<1x1x32xf32> to vector<2x8x32xf32>
    %30 = arith.mulf %26, %29 : vector<2x8x32xf32>
    %31 = vector.extract_strided_slice %8 {offsets = [1, 0], sizes = [1, 32], strides = [1, 1]} : vector<9x32xf32> to vector<1x32xf32>
    %32 = vector.shape_cast %31 : vector<1x32xf32> to vector<1x1x32xf32>
    %33 = vector.broadcast %32 : vector<1x1x32xf32> to vector<2x8x32xf32>
    %34 = arith.addf %30, %33 : vector<2x8x32xf32>
    %35 = arith.truncf %34 : vector<2x8x32xf32> to vector<2x8x32xbf16>
    %36 = vector.shape_cast %35 : vector<2x8x32xbf16> to vector<16x32xbf16>
    %c0_14 = arith.constant 0 : index
    %c0_15 = arith.constant 0 : index
    %c0_16 = arith.constant 0 : index
    %37 = vector.load %arg5[%c0_14, %c0_15, %c0_16] : memref<1x32x96xbf16, #tpu.memory_space<vmem>>, vector<1x32x96xbf16>
    %38 = vector.shape_cast %37 : vector<1x32x96xbf16> to vector<32x96xbf16>
    %cst_17 = arith.constant dense<0.000000e+00> : vector<16x96xf32>
    %39 = tpu.matmul %36, %38, %cst_17 {dimension_numbers = #tpu.dot_dimension_numbers<[1], [0], [0], [1], [0, 0, 1, 1], [], []>} : vector<16x32xbf16>, vector<32x96xbf16>, vector<16x96xf32> -> vector<16x96xf32>
    %40 = vector.extract_strided_slice %39 {offsets = [0, 0], sizes = [16, 32], strides = [1, 1]} : vector<16x96xf32> to vector<16x32xf32>
    %41 = vector.extract_strided_slice %8 {offsets = [2, 0], sizes = [1, 32], strides = [1, 1]} : vector<9x32xf32> to vector<1x32xf32>
    %42 = vector.broadcast %41 : vector<1x32xf32> to vector<16x32xf32>
    %43 = arith.addf %40, %42 : vector<16x32xf32>
    %44 = vector.shape_cast %43 : vector<16x32xf32> to vector<2x8x32xf32>
    %45 = vector.extract_strided_slice %39 {offsets = [0, 32], sizes = [16, 32], strides = [1, 1]} : vector<16x96xf32> to vector<16x32xf32>
    %46 = vector.extract_strided_slice %8 {offsets = [3, 0], sizes = [1, 32], strides = [1, 1]} : vector<9x32xf32> to vector<1x32xf32>
    %47 = vector.broadcast %46 : vector<1x32xf32> to vector<16x32xf32>
    %48 = arith.addf %45, %47 : vector<16x32xf32>
    %49 = vector.shape_cast %48 : vector<16x32xf32> to vector<2x8x32xf32>
    %50 = vector.extract_strided_slice %39 {offsets = [0, 64], sizes = [16, 32], strides = [1, 1]} : vector<16x96xf32> to vector<16x32xf32>
    %51 = vector.extract_strided_slice %8 {offsets = [4, 0], sizes = [1, 32], strides = [1, 1]} : vector<9x32xf32> to vector<1x32xf32>
    %52 = vector.broadcast %51 : vector<1x32xf32> to vector<16x32xf32>
    %53 = arith.addf %50, %52 : vector<16x32xf32>
    %54 = vector.shape_cast %53 : vector<16x32xf32> to vector<2x8x32xf32>
    %55 = vector.extract_strided_slice %44 {offsets = [0, 0, 0], sizes = [2, 8, 16], strides = [1, 1, 1]} : vector<2x8x32xf32> to vector<2x8x16xf32>
    %56 = arith.truncf %55 : vector<2x8x16xf32> to vector<2x8x16xbf16>
    %57 = vector.extract_strided_slice %49 {offsets = [0, 0, 0], sizes = [2, 8, 16], strides = [1, 1, 1]} : vector<2x8x32xf32> to vector<2x8x16xf32>
    %58 = arith.truncf %57 : vector<2x8x16xf32> to vector<2x8x16xbf16>
    %59 = vector.extract_strided_slice %54 {offsets = [0, 0, 0], sizes = [2, 8, 16], strides = [1, 1, 1]} : vector<2x8x32xf32> to vector<2x8x16xf32>
    %60 = arith.truncf %59 : vector<2x8x16xf32> to vector<2x8x16xbf16>
    "tpu.trace_start"() <{level = 10 : i32, message = "bqd,bkd->bqk"}> : () -> ()
    %cst_18 = arith.constant dense<0.000000e+00> : vector<2x8x8xf32>
    %61 = tpu.matmul %56, %58, %cst_18 {dimension_numbers = #tpu.dot_dimension_numbers<[2], [2], [1], [1], [0, 0, 0, 1, 1, 1], [0], [0]>} : vector<2x8x16xbf16>, vector<2x8x16xbf16>, vector<2x8x8xf32> -> vector<2x8x8xf32>
    "tpu.trace_stop"() : () -> ()
    %cst_19 = arith.constant dense<0xFF800000> : vector<2x8xf32>
    %62 = vector.multi_reduction <maximumf>, %61, %cst_19 [2] : vector<2x8x8xf32> to vector<2x8xf32>
    %63 = vector.shape_cast %62 : vector<2x8xf32> to vector<2x8x1xf32>
    %64 = vector.broadcast %63 : vector<2x8x1xf32> to vector<2x8x8xf32>
    %65 = arith.subf %61, %64 : vector<2x8x8xf32>
    %66 = math.exp %65 : vector<2x8x8xf32>
    %cst_20 = arith.constant dense<0.000000e+00> : vector<2x8xf32>
    %67 = vector.multi_reduction <add>, %66, %cst_20 [2] : vector<2x8x8xf32> to vector<2x8xf32>
    %68 = vector.shape_cast %67 : vector<2x8xf32> to vector<2x8x1xf32>
    %69 = tpu.reciprocal %68 {approx = true} : vector<2x8x1xf32> -> vector<2x8x1xf32>
    %70 = vector.broadcast %69 : vector<2x8x1xf32> to vector<2x8x8xf32>
    %71 = arith.mulf %66, %70 : vector<2x8x8xf32>
    %72 = arith.truncf %71 : vector<2x8x8xf32> to vector<2x8x8xbf16>
    "tpu.trace_start"() <{level = 10 : i32, message = "bqk,bkd->bqd"}> : () -> ()
    %cst_21 = arith.constant dense<0.000000e+00> : vector<2x8x16xf32>
    %73 = tpu.matmul %72, %60, %cst_21 {dimension_numbers = #tpu.dot_dimension_numbers<[2], [1], [1], [2], [0, 0, 0, 1, 1, 2], [0], [0]>} : vector<2x8x8xbf16>, vector<2x8x16xbf16>, vector<2x8x16xf32> -> vector<2x8x16xf32>
    "tpu.trace_stop"() : () -> ()
    %74 = arith.truncf %73 : vector<2x8x16xf32> to vector<2x8x16xbf16>
    %75 = vector.extract_strided_slice %44 {offsets = [0, 0, 16], sizes = [2, 8, 16], strides = [1, 1, 1]} : vector<2x8x32xf32> to vector<2x8x16xf32>
    %76 = arith.truncf %75 : vector<2x8x16xf32> to vector<2x8x16xbf16>
    %77 = vector.extract_strided_slice %49 {offsets = [0, 0, 16], sizes = [2, 8, 16], strides = [1, 1, 1]} : vector<2x8x32xf32> to vector<2x8x16xf32>
    %78 = arith.truncf %77 : vector<2x8x16xf32> to vector<2x8x16xbf16>
    %79 = vector.extract_strided_slice %54 {offsets = [0, 0, 16], sizes = [2, 8, 16], strides = [1, 1, 1]} : vector<2x8x32xf32> to vector<2x8x16xf32>
    %80 = arith.truncf %79 : vector<2x8x16xf32> to vector<2x8x16xbf16>
    "tpu.trace_start"() <{level = 10 : i32, message = "bqd,bkd->bqk"}> : () -> ()
    %cst_22 = arith.constant dense<0.000000e+00> : vector<2x8x8xf32>
    %81 = tpu.matmul %76, %78, %cst_22 {dimension_numbers = #tpu.dot_dimension_numbers<[2], [2], [1], [1], [0, 0, 0, 1, 1, 1], [0], [0]>} : vector<2x8x16xbf16>, vector<2x8x16xbf16>, vector<2x8x8xf32> -> vector<2x8x8xf32>
    "tpu.trace_stop"() : () -> ()
    %cst_23 = arith.constant dense<0xFF800000> : vector<2x8xf32>
    %82 = vector.multi_reduction <maximumf>, %81, %cst_23 [2] : vector<2x8x8xf32> to vector<2x8xf32>
    %83 = vector.shape_cast %82 : vector<2x8xf32> to vector<2x8x1xf32>
    %84 = vector.broadcast %83 : vector<2x8x1xf32> to vector<2x8x8xf32>
    %85 = arith.subf %81, %84 : vector<2x8x8xf32>
    %86 = math.exp %85 : vector<2x8x8xf32>
    %cst_24 = arith.constant dense<0.000000e+00> : vector<2x8xf32>
    %87 = vector.multi_reduction <add>, %86, %cst_24 [2] : vector<2x8x8xf32> to vector<2x8xf32>
    %88 = vector.shape_cast %87 : vector<2x8xf32> to vector<2x8x1xf32>
    %89 = tpu.reciprocal %88 {approx = true} : vector<2x8x1xf32> -> vector<2x8x1xf32>
    %90 = vector.broadcast %89 : vector<2x8x1xf32> to vector<2x8x8xf32>
    %91 = arith.mulf %86, %90 : vector<2x8x8xf32>
    %92 = arith.truncf %91 : vector<2x8x8xf32> to vector<2x8x8xbf16>
    "tpu.trace_start"() <{level = 10 : i32, message = "bqk,bkd->bqd"}> : () -> ()
    %cst_25 = arith.constant dense<0.000000e+00> : vector<2x8x16xf32>
    %93 = tpu.matmul %92, %80, %cst_25 {dimension_numbers = #tpu.dot_dimension_numbers<[2], [1], [1], [2], [0, 0, 0, 1, 1, 2], [0], [0]>} : vector<2x8x8xbf16>, vector<2x8x16xbf16>, vector<2x8x16xf32> -> vector<2x8x16xf32>
    "tpu.trace_stop"() : () -> ()
    %94 = arith.truncf %93 : vector<2x8x16xf32> to vector<2x8x16xbf16>
    %95 = tpu.concatenate %74, %94 in 2 : vector<2x8x16xbf16>, vector<2x8x16xbf16> -> vector<2x8x32xbf16>
    %96 = vector.shape_cast %95 : vector<2x8x32xbf16> to vector<16x32xbf16>
    %c0_26 = arith.constant 0 : index
    %c0_27 = arith.constant 0 : index
    %c0_28 = arith.constant 0 : index
    %97 = vector.load %arg6[%c0_26, %c0_27, %c0_28] : memref<1x32x32xbf16, #tpu.memory_space<vmem>>, vector<1x32x32xbf16>
    %98 = vector.shape_cast %97 : vector<1x32x32xbf16> to vector<32x32xbf16>
    %cst_29 = arith.constant dense<0.000000e+00> : vector<16x32xf32>
    %99 = tpu.matmul %96, %98, %cst_29 {dimension_numbers = #tpu.dot_dimension_numbers<[1], [0], [0], [1], [0, 0, 1, 1], [], []>} : vector<16x32xbf16>, vector<32x32xbf16>, vector<16x32xf32> -> vector<16x32xf32>
    %100 = vector.extract_strided_slice %8 {offsets = [5, 0], sizes = [1, 32], strides = [1, 1]} : vector<9x32xf32> to vector<1x32xf32>
    %101 = vector.broadcast %100 : vector<1x32xf32> to vector<16x32xf32>
    %102 = arith.addf %99, %101 : vector<16x32xf32>
    %103 = vector.shape_cast %102 : vector<16x32xf32> to vector<2x8x32xf32>
    %104 = arith.addf %3, %103 : vector<2x8x32xf32>
    %cst_30 = arith.constant dense<0.000000e+00> : vector<2x8xf32>
    %105 = vector.multi_reduction <add>, %104, %cst_30 [2] : vector<2x8x32xf32> to vector<2x8xf32>
    %106 = vector.shape_cast %105 : vector<2x8xf32> to vector<2x8x1xf32>
    %cst_31 = arith.constant 3.200000e+01 : f32
    %107 = vector.broadcast %cst_31 : f32 to vector<2x8x1xf32>
    %108 = arith.divf %106, %107 : vector<2x8x1xf32>
    %109 = vector.broadcast %108 : vector<2x8x1xf32> to vector<2x8x32xf32>
    %110 = arith.subf %104, %109 : vector<2x8x32xf32>
    %111 = arith.mulf %110, %110 : vector<2x8x32xf32>
    %cst_32 = arith.constant dense<0.000000e+00> : vector<2x8xf32>
    %112 = vector.multi_reduction <add>, %111, %cst_32 [2] : vector<2x8x32xf32> to vector<2x8xf32>
    %113 = vector.shape_cast %112 : vector<2x8xf32> to vector<2x8x1xf32>
    %cst_33 = arith.constant 3.200000e+01 : f32
    %114 = vector.broadcast %cst_33 : f32 to vector<2x8x1xf32>
    %115 = arith.divf %113, %114 : vector<2x8x1xf32>
    %116 = vector.broadcast %108 : vector<2x8x1xf32> to vector<2x8x32xf32>
    %117 = arith.subf %104, %116 : vector<2x8x32xf32>
    %cst_34 = arith.constant 9.99999974E-6 : f32
    %118 = vector.broadcast %cst_34 : f32 to vector<2x8x1xf32>
    %119 = arith.addf %115, %118 : vector<2x8x1xf32>
    %120 = math.rsqrt %119 : vector<2x8x1xf32>
    %121 = vector.broadcast %120 : vector<2x8x1xf32> to vector<2x8x32xf32>
    %122 = arith.mulf %117, %121 : vector<2x8x32xf32>
    %123 = vector.extract_strided_slice %8 {offsets = [6, 0], sizes = [1, 32], strides = [1, 1]} : vector<9x32xf32> to vector<1x32xf32>
    %124 = vector.shape_cast %123 : vector<1x32xf32> to vector<1x1x32xf32>
    %125 = vector.broadcast %124 : vector<1x1x32xf32> to vector<2x8x32xf32>
    %126 = arith.mulf %122, %125 : vector<2x8x32xf32>
    %127 = vector.extract_strided_slice %8 {offsets = [7, 0], sizes = [1, 32], strides = [1, 1]} : vector<9x32xf32> to vector<1x32xf32>
    %128 = vector.shape_cast %127 : vector<1x32xf32> to vector<1x1x32xf32>
    %129 = vector.broadcast %128 : vector<1x1x32xf32> to vector<2x8x32xf32>
    %130 = arith.addf %126, %129 : vector<2x8x32xf32>
    %131 = arith.truncf %130 : vector<2x8x32xf32> to vector<2x8x32xbf16>
    %132 = vector.shape_cast %131 : vector<2x8x32xbf16> to vector<16x32xbf16>
    %c0_35 = arith.constant 0 : index
    %c0_36 = arith.constant 0 : index
    %c0_37 = arith.constant 0 : index
    %133 = vector.load %arg7[%c0_35, %c0_36, %c0_37] : memref<1x32x64xbf16, #tpu.memory_space<vmem>>, vector<1x32x64xbf16>
    %134 = vector.shape_cast %133 : vector<1x32x64xbf16> to vector<32x64xbf16>
    %cst_38 = arith.constant dense<0.000000e+00> : vector<16x64xf32>
    %135 = tpu.matmul %132, %134, %cst_38 {dimension_numbers = #tpu.dot_dimension_numbers<[1], [0], [0], [1], [0, 0, 1, 1], [], []>} : vector<16x32xbf16>, vector<32x64xbf16>, vector<16x64xf32> -> vector<16x64xf32>
    %c0_39 = arith.constant 0 : index
    %c0_40 = arith.constant 0 : index
    %c0_41 = arith.constant 0 : index
    %136 = vector.load %arg4[%c0_39, %c0_40, %c0_41] : memref<1x1x64xf32, #tpu.memory_space<vmem>>, vector<1x1x64xf32>
    %137 = vector.shape_cast %136 : vector<1x1x64xf32> to vector<1x64xf32>
    %138 = vector.broadcast %137 : vector<1x64xf32> to vector<16x64xf32>
    %139 = arith.addf %135, %138 : vector<16x64xf32>
    %140 = arith.mulf %139, %139 : vector<16x64xf32>
    %141 = arith.mulf %139, %140 : vector<16x64xf32>
    %cst_42 = arith.constant 4.471500e-02 : f32
    %142 = vector.broadcast %cst_42 : f32 to vector<16x64xf32>
    %143 = arith.mulf %142, %141 : vector<16x64xf32>
    %144 = arith.addf %139, %143 : vector<16x64xf32>
    %cst_43 = arith.constant 0.797884583 : f32
    %145 = vector.broadcast %cst_43 : f32 to vector<16x64xf32>
    %146 = arith.mulf %145, %144 : vector<16x64xf32>
    %147 = math.tanh %146 : vector<16x64xf32>
    %cst_44 = arith.constant 1.000000e+00 : f32
    %148 = vector.broadcast %cst_44 : f32 to vector<16x64xf32>
    %149 = arith.addf %148, %147 : vector<16x64xf32>
    %cst_45 = arith.constant 5.000000e-01 : f32
    %150 = vector.broadcast %cst_45 : f32 to vector<16x64xf32>
    %151 = arith.mulf %150, %149 : vector<16x64xf32>
    %152 = arith.mulf %139, %151 : vector<16x64xf32>
    %153 = arith.truncf %152 : vector<16x64xf32> to vector<16x64xbf16>
    %c0_46 = arith.constant 0 : index
    %c0_47 = arith.constant 0 : index
    %c0_48 = arith.constant 0 : index
    %154 = vector.load %arg8[%c0_46, %c0_47, %c0_48] : memref<1x64x32xbf16, #tpu.memory_space<vmem>>, vector<1x64x32xbf16>
    %155 = vector.shape_cast %154 : vector<1x64x32xbf16> to vector<64x32xbf16>
    %cst_49 = arith.constant dense<0.000000e+00> : vector<16x32xf32>
    %156 = tpu.matmul %153, %155, %cst_49 {dimension_numbers = #tpu.dot_dimension_numbers<[1], [0], [0], [1], [0, 0, 1, 1], [], []>} : vector<16x64xbf16>, vector<64x32xbf16>, vector<16x32xf32> -> vector<16x32xf32>
    %157 = vector.extract_strided_slice %8 {offsets = [8, 0], sizes = [1, 32], strides = [1, 1]} : vector<9x32xf32> to vector<1x32xf32>
    %158 = vector.broadcast %157 : vector<1x32xf32> to vector<16x32xf32>
    %159 = arith.addf %156, %158 : vector<16x32xf32>
    %160 = vector.shape_cast %159 : vector<16x32xf32> to vector<2x8x32xf32>
    %161 = arith.addf %104, %160 : vector<2x8x32xf32>
    %c0_50 = arith.constant 0 : index
    %c0_51 = arith.constant 0 : index
    %c0_52 = arith.constant 0 : index
    %162 = vector.load %arg11[%c0_50, %c0_51, %c0_52] : memref<2x8x32xf32, #tpu.memory_space<vmem>>, vector<2x8x32xf32>
    tpu.vector_store %arg11[%c0_50, %c0_51, %c0_52], %161 {strides = array<i32>} : memref<2x8x32xf32, #tpu.memory_space<vmem>>, vector<2x8x32xf32>,
    %c3_i32 = arith.constant 3 : i32
    %163 = arith.cmpi eq, %arg1, %c3_i32 : i32
    %164 = arith.extui %163 : i1 to i32
    %c0_i32_53 = arith.constant 0 : i32
    %165 = arith.cmpi ne, %164, %c0_i32_53 : i32
    scf.if %165 {
      %c0_54 = arith.constant 0 : index
      %c0_55 = arith.constant 0 : index
      %c0_56 = arith.constant 0 : index
      %166 = vector.load %arg9[%c0_54, %c0_55, %c0_56] : memref<2x8x32xf32, #tpu.memory_space<vmem>>, vector<2x8x32xf32>
      tpu.vector_store %arg9[%c0_54, %c0_55, %c0_56], %161 {strides = array<i32>} : memref<2x8x32xf32, #tpu.memory_space<vmem>>, vector<2x8x32xf32>,
    } else {
    }
    return
  }
  func.func @transform_0(%arg0: i32, %arg1: i32) -> (i32, i32, i32) {
    %c0_i32 = arith.constant 0 : i32
    %c0_i32_0 = arith.constant 0 : i32
    %c0_i32_1 = arith.constant 0 : i32
    return %arg0, %c0_i32, %c0_i32_0 : i32, i32, i32
  }
  func.func @transform_1(%arg0: i32, %arg1: i32) -> (i32, i32, i32) {
    %c0_i32 = arith.constant 0 : i32
    %c0_i32_0 = arith.constant 0 : i32
    %c0_i32_1 = arith.constant 0 : i32
    return %arg1, %c0_i32, %c0_i32_0 : i32, i32, i32
  }
  func.func @transform_2(%arg0: i32, %arg1: i32) -> (i32, i32, i32) {
    %c0_i32 = arith.constant 0 : i32
    %c0_i32_0 = arith.constant 0 : i32
    %c0_i32_1 = arith.constant 0 : i32
    return %arg1, %c0_i32, %c0_i32_0 : i32, i32, i32
  }
  func.func @transform_3(%arg0: i32, %arg1: i32) -> (i32, i32, i32) {
    %c0_i32 = arith.constant 0 : i32
    %c0_i32_0 = arith.constant 0 : i32
    %c0_i32_1 = arith.constant 0 : i32
    return %arg1, %c0_i32, %c0_i32_0 : i32, i32, i32
  }
  func.func @transform_4(%arg0: i32, %arg1: i32) -> (i32, i32, i32) {
    %c0_i32 = arith.constant 0 : i32
    %c0_i32_0 = arith.constant 0 : i32
    %c0_i32_1 = arith.constant 0 : i32
    return %arg1, %c0_i32, %c0_i32_0 : i32, i32, i32
  }
  func.func @transform_5(%arg0: i32, %arg1: i32) -> (i32, i32, i32) {
    %c0_i32 = arith.constant 0 : i32
    %c0_i32_0 = arith.constant 0 : i32
    %c0_i32_1 = arith.constant 0 : i32
    return %arg1, %c0_i32, %c0_i32_0 : i32, i32, i32
  }
  func.func @transform_6(%arg0: i32, %arg1: i32) -> (i32, i32, i32) {
    %c0_i32 = arith.constant 0 : i32
    %c0_i32_0 = arith.constant 0 : i32
    %c0_i32_1 = arith.constant 0 : i32
    return %arg1, %c0_i32, %c0_i32_0 : i32, i32, i32
  }
  func.func @transform_7(%arg0: i32, %arg1: i32) -> (i32, i32, i32) {
    %c0_i32 = arith.constant 0 : i32
    %c0_i32_0 = arith.constant 0 : i32
    %c0_i32_1 = arith.constant 0 : i32
    return %arg0, %c0_i32, %c0_i32_0 : i32, i32, i32
  }
  func.func @transform_8(%arg0: i32, %arg1: i32) -> (i32, i32, i32, i32) {
    %c0_i32 = arith.constant 0 : i32
    %c0_i32_0 = arith.constant 0 : i32
    %c0_i32_1 = arith.constant 0 : i32
    return %arg1, %arg0, %c0_i32, %c0_i32_0 : i32, i32, i32, i32
  }
}

</mosaic_0001>

<llo_original>
// kernel: transformer_blocks_forward.1
$region0: #{transformer_blocks_forward.1}
  #allocation0 [shape = 'u32[]', space=smem, size = 0x4, offset = 0x4, fixed_abs, tag = 'smem constant byte address 0x4 - core index']
  #allocation1 [shape = 'u32[144,128]{1,0:T(1,128)}', space=vmem, size = 0x12000, scoped, tag = 'internal scratch']
  #allocation2 [shape = 'f32[2,8,32]{2,1,0:T(8,128)}', space=vmem, size = 0x2000, scoped, tag = 'scratch operand']
  %s0 = inlined_call_operand.vmem [shape: f32[2,8,32], index: 0, kind: input, shape index: {}]
  %s1 = inlined_call_operand.vmem [shape: f32[4,9,32], index: 1, kind: input, shape index: {}]
  %s2 = inlined_call_operand.vmem [shape: f32[4,1,64], index: 2, kind: input, shape index: {}]
  %s3 = inlined_call_operand.vmem [shape: bf16[4,32,96], index: 3, kind: input, shape index: {}]
  %s4 = inlined_call_operand.vmem [shape: bf16[4,32,32], index: 4, kind: input, shape index: {}]
  %s5 = inlined_call_operand.vmem [shape: bf16[4,32,64], index: 5, kind: input, shape index: {}]
  %s6 = inlined_call_operand.vmem [shape: bf16[4,64,32], index: 6, kind: input, shape index: {}]
  %s7 = inlined_call_operand.hbm [shape: f32[2,8,32], index: 7, kind: output, shape index: {0}]
  %s8 = inlined_call_operand.hbm [shape: f32[4,2,8,32], index: 8, kind: output, shape index: {1}]
  %9 = xla_tuple %s7, %s8
  %s10 = sld [smem:[#allocation0]]
  $region77: #{transformer_blocks_forward.1} parent=0
    _
  %s12 = ssub.s32 1, %s10
  %s13 = scalar_select 0, %s12, %s10
  $region1: #{transformer_blocks_forward.1} parent=0
    #allocation3 [shape = 'u8[8192]{0}', space=vmem, size = 0x2000, scoped, tag = 'output window, operand 0, single buffered']
    #allocation4 [shape = 's32[2]{0}', space=sflag, size = 0x8, scoped, tag = 'scoped memory for transformer_blocks_forward.1']
    #allocation5 [shape = 'u8[16384]{0}', space=vmem, size = 0x4000, scoped, tag = 'output window, operand 1']
    #allocation6 [shape = 's32[2]{0}', space=sflag, size = 0x8, scoped, tag = 'scoped memory for transformer_blocks_forward.1']
    %14 = vsyncpa [#allocation4], 0
    %15 = vsyncpa [#allocation6], 0
    %s16 = scalar_lea.sflag [#allocation6], 1
    %17 = vsyncpa %s16, 0
    loop: start=0, step=1, limit=6
    $region2: #{transformer_blocks_forward.1} parent=1 // loop_pre_header
      _
    $region3: #{transformer_blocks_forward.1} parent=1 // loop_header
      %s19 = sphi 0, %s23
      %p20 = scmp.ge.s32.totalorder %s19, 6
      %s26 = sphi 0, %s38
      %s27 = sphi 0, %s34
      %s28 = sphi 0, %s26
      %s29 = sphi 0, %s27
      %s30 = sphi 0, %s28
      %s31 = sphi 0, %s29
      %s41 = sphi 0, %s43
      %s44 = sphi 0, %s41
      %s45 = sphi 0, %s44
      %s61 = sphi 0, %s45
      %s67 = sphi 0, %s69
      %s70 = sphi 0, %s67
      %s71 = sphi 0, %s70
      %s87 = sphi 0, %s71
      %s93 = sphi 0, %s95
      %s96 = sphi 0, %s93
      %s97 = sphi 0, %s96
      %s113 = sphi 0, %s97
      %s119 = sphi 0, %s121
      %s122 = sphi 0, %s119
      %s123 = sphi 0, %s122
      %s139 = sphi 0, %s123
      %s145 = sphi 0, %s147
      %s148 = sphi 0, %s145
      %s149 = sphi 0, %s148
      %s165 = sphi 0, %s149
      %s171 = sphi 0, %s173
      %s174 = sphi 0, %s171
      %s175 = sphi 0, %s174
      %s191 = sphi 0, %s175
      %s197 = sphi 0, %s199
      %s200 = sphi 0, %s197
      %s201 = sphi 0, %s200
      %s217 = sphi 0, %s201
      %s223 = sphi 0, %s225
      %s226 = sphi 0, %s223
      %s227 = sphi 0, %s226
      %s243 = sphi 0, %s227
      %s251 = sphi 0, %s253
      %s254 = sphi 0, %s251
      %s255 = sphi 0, %s254
      %s271 = sphi 0, %s255
    $region4: #{transformer_blocks_forward.1} parent=1 // loop_header_branch
      %22 = sbr.rel (%p20) target = $region8
    $region5: #{transformer_blocks_forward.1} parent=1 // loop_body
      %s24 = ssub.s32 %s19, 1
      %s25 = ssub.s32 %s19, 2
      %s32 = sadd.s32 1, %s27
      %p33 = scmp.ge.s32.totalorder %s32, 4
      %s34 = scalar_select %p33, 0, %s32
      %s35 = sadd.s32 1, %s26
      %s36 = scalar_select %p33, %s35, %s26
      %p37 = scmp.ge.s32.totalorder %s36, 1
      %s38 = scalar_select %p37, 0, %s36
      %s39 = ssub.s32 %s26, %s38
      %p40 = scmp.eq.s32.totalorder %s39, 0
      %s42 = sadd.s32 %s41, 1
      %s43 = scalar_select %p40, %s41, %s42
      %p46 = pneg %p40
      %p47 = scmp.eq.s32.totalorder %s19, 3
      %p48 = por %p46, %p47
      %p49 = scmp.ne.s32.totalorder %s41, %s44
      %p50 = scmp.eq.s32.totalorder %s19, 0
      %p51 = por %p49, %p50
      %p52 = scmp.ne.s32.totalorder %s41, %s44
      %p53 = scmp.eq.s32.totalorder %s24, 3
      %p54 = por %p52, %p53
      %p55 = scmp.ne.s32.totalorder %s44, %s45
      %p56 = scmp.eq.s32.totalorder %s24, 0
      %p57 = por %p55, %p56
      %p58 = scmp.ne.s32.totalorder %s44, %s45
      %p59 = scmp.eq.s32.totalorder %s25, 3
      %p60 = por %p58, %p59
      %p62 = scmp.ne.s32.totalorder %s45, %s61
      %p63 = scmp.eq.s32.totalorder %s25, 0
      %p64 = por %p62, %p63
      %s65 = ssub.s32 %s27, %s34
      %p66 = scmp.eq.s32.totalorder %s65, 0
      %s68 = sadd.s32 %s67, 1
      %s69 = scalar_select %p66, %s67, %s68
      %p72 = pneg %p66
      %p73 = scmp.eq.s32.totalorder %s19, 3
      %p74 = por %p72, %p73
      %p75 = scmp.ne.s32.totalorder %s67, %s70
      %p76 = scmp.eq.s32.totalorder %s19, 0
      %p77 = por %p75, %p76
      %p78 = scmp.ne.s32.totalorder %s67, %s70
      %p79 = scmp.eq.s32.totalorder %s24, 3
      %p80 = por %p78, %p79
      %p81 = scmp.ne.s32.totalorder %s70, %s71
      %p82 = scmp.eq.s32.totalorder %s24, 0
      %p83 = por %p81, %p82
      %p84 = scmp.ne.s32.totalorder %s70, %s71
      %p85 = scmp.eq.s32.totalorder %s25, 3
      %p86 = por %p84, %p85
      %p88 = scmp.ne.s32.totalorder %s71, %s87
      %p89 = scmp.eq.s32.totalorder %s25, 0
      %p90 = por %p88, %p89
      %s91 = ssub.s32 %s27, %s34
      %p92 = scmp.eq.s32.totalorder %s91, 0
      %s94 = sadd.s32 %s93, 1
      %s95 = scalar_select %p92, %s93, %s94
      %p98 = pneg %p92
      %p99 = scmp.eq.s32.totalorder %s19, 3
      %p100 = por %p98, %p99
      %p101 = scmp.ne.s32.totalorder %s93, %s96
      %p102 = scmp.eq.s32.totalorder %s19, 0
      %p103 = por %p101, %p102
      %p104 = scmp.ne.s32.totalorder %s93, %s96
      %p105 = scmp.eq.s32.totalorder %s24, 3
      %p106 = por %p104, %p105
      %p107 = scmp.ne.s32.totalorder %s96, %s97
      %p108 = scmp.eq.s32.totalorder %s24, 0
      %p109 = por %p107, %p108
      %p110 = scmp.ne.s32.totalorder %s96, %s97
      %p111 = scmp.eq.s32.totalorder %s25, 3
      %p112 = por %p110, %p111
      %p114 = scmp.ne.s32.totalorder %s97, %s113
      %p115 = scmp.eq.s32.totalorder %s25, 0
      %p116 = por %p114, %p115
      %s117 = ssub.s32 %s27, %s34
      %p118 = scmp.eq.s32.totalorder %s117, 0
      %s120 = sadd.s32 %s119, 1
      %s121 = scalar_select %p118, %s119, %s120
      %p124 = pneg %p118
      %p125 = scmp.eq.s32.totalorder %s19, 3
      %p126 = por %p124, %p125
      %p127 = scmp.ne.s32.totalorder %s119, %s122
      %p128 = scmp.eq.s32.totalorder %s19, 0
      %p129 = por %p127, %p128
      %p130 = scmp.ne.s32.totalorder %s119, %s122
      %p131 = scmp.eq.s32.totalorder %s24, 3
      %p132 = por %p130, %p131
      %p133 = scmp.ne.s32.totalorder %s122, %s123
      %p134 = scmp.eq.s32.totalorder %s24, 0
      %p135 = por %p133, %p134
      %p136 = scmp.ne.s32.totalorder %s122, %s123
      %p137 = scmp.eq.s32.totalorder %s25, 3
      %p138 = por %p136, %p137
      %p140 = scmp.ne.s32.totalorder %s123, %s139
      %p141 = scmp.eq.s32.totalorder %s25, 0
      %p142 = por %p140, %p141
      %s143 = ssub.s32 %s27, %s34
      %p144 = scmp.eq.s32.totalorder %s143, 0
      %s146 = sadd.s32 %s145, 1
      %s147 = scalar_select %p144, %s145, %s146
      %p150 = pneg %p144
      %p151 = scmp.eq.s32.totalorder %s19, 3
      %p152 = por %p150, %p151
      %p153 = scmp.ne.s32.totalorder %s145, %s148
      %p154 = scmp.eq.s32.totalorder %s19, 0
      %p155 = por %p153, %p154
      %p156 = scmp.ne.s32.totalorder %s145, %s148
      %p157 = scmp.eq.s32.totalorder %s24, 3
      %p158 = por %p156, %p157
      %p159 = scmp.ne.s32.totalorder %s148, %s149
      %p160 = scmp.eq.s32.totalorder %s24, 0
      %p161 = por %p159, %p160
      %p162 = scmp.ne.s32.totalorder %s148, %s149
      %p163 = scmp.eq.s32.totalorder %s25, 3
      %p164 = por %p162, %p163
      %p166 = scmp.ne.s32.totalorder %s149, %s165
      %p167 = scmp.eq.s32.totalorder %s25, 0
      %p168 = por %p166, %p167
      %s169 = ssub.s32 %s27, %s34
      %p170 = scmp.eq.s32.totalorder %s169, 0
      %s172 = sadd.s32 %s171, 1
      %s173 = scalar_select %p170, %s171, %s172
      %p176 = pneg %p170
      %p177 = scmp.eq.s32.totalorder %s19, 3
      %p178 = por %p176, %p177
      %p179 = scmp.ne.s32.totalorder %s171, %s174
      %p180 = scmp.eq.s32.totalorder %s19, 0
      %p181 = por %p179, %p180
      %p182 = scmp.ne.s32.totalorder %s171, %s174
      %p183 = scmp.eq.s32.totalorder %s24, 3
      %p184 = por %p182, %p183
      %p185 = scmp.ne.s32.totalorder %s174, %s175
      %p186 = scmp.eq.s32.totalorder %s24, 0
      %p187 = por %p185, %p186
      %p188 = scmp.ne.s32.totalorder %s174, %s175
      %p189 = scmp.eq.s32.totalorder %s25, 3
      %p190 = por %p188, %p189
      %p192 = scmp.ne.s32.totalorder %s175, %s191
      %p193 = scmp.eq.s32.totalorder %s25, 0
      %p194 = por %p192, %p193
      %s195 = ssub.s32 %s27, %s34
      %p196 = scmp.eq.s32.totalorder %s195, 0
      %s198 = sadd.s32 %s197, 1
      %s199 = scalar_select %p196, %s197, %s198
      %p202 = pneg %p196
      %p203 = scmp.eq.s32.totalorder %s19, 3
      %p204 = por %p202, %p203
      %p205 = scmp.ne.s32.totalorder %s197, %s200
      %p206 = scmp.eq.s32.totalorder %s19, 0
      %p207 = por %p205, %p206
      %p208 = scmp.ne.s32.totalorder %s197, %s200
      %p209 = scmp.eq.s32.totalorder %s24, 3
      %p210 = por %p208, %p209
      %p211 = scmp.ne.s32.totalorder %s200, %s201
      %p212 = scmp.eq.s32.totalorder %s24, 0
      %p213 = por %p211, %p212
      %p214 = scmp.ne.s32.totalorder %s200, %s201
      %p215 = scmp.eq.s32.totalorder %s25, 3
      %p216 = por %p214, %p215
      %p218 = scmp.ne.s32.totalorder %s201, %s217
      %p219 = scmp.eq.s32.totalorder %s25, 0
      %p220 = por %p218, %p219
      %s221 = ssub.s32 %s26, %s38
      %p222 = scmp.eq.s32.totalorder %s221, 0
      %s224 = sadd.s32 %s223, 1
      %s225 = scalar_select %p222, %s223, %s224
      %p228 = pneg %p222
      %p229 = scmp.eq.s32.totalorder %s19, 3
      %p230 = por %p228, %p229
      %p231 = scmp.ne.s32.totalorder %s223, %s226
      %p232 = scmp.eq.s32.totalorder %s19, 0
      %p233 = por %p231, %p232
      %p234 = scmp.ne.s32.totalorder %s223, %s226
      %p235 = scmp.eq.s32.totalorder %s24, 3
      %p236 = por %p234, %p235
      %p237 = scmp.ne.s32.totalorder %s226, %s227
      %p238 = scmp.eq.s32.totalorder %s24, 0
      %p239 = por %p237, %p238
      %p240 = scmp.ne.s32.totalorder %s226, %s227
      %p241 = scmp.eq.s32.totalorder %s25, 3
      %p242 = por %p240, %p241
      %p244 = scmp.ne.s32.totalorder %s227, %s243
      %p245 = scmp.eq.s32.totalorder %s25, 0
      %p246 = por %p244, %p245
      %s247 = ssub.s32 %s27, %s34
      %s248 = ssub.s32 %s26, %s38
      %s249 = sor.u32 %s247, %s248
      %p250 = scmp.eq.s32.totalorder %s249, 0
      %s252 = sadd.s32 %s251, 1
      %s253 = scalar_select %p250, %s251, %s252
      %p256 = pneg %p250
      %p257 = scmp.eq.s32.totalorder %s19, 3
      %p258 = por %p256, %p257
      %p259 = scmp.ne.s32.totalorder %s251, %s254
      %p260 = scmp.eq.s32.totalorder %s19, 0
      %p261 = por %p259, %p260
      %p262 = scmp.ne.s32.totalorder %s251, %s254
      %p263 = scmp.eq.s32.totalorder %s24, 3
      %p264 = por %p262, %p263
      %p265 = scmp.ne.s32.totalorder %s254, %s255
      %p266 = scmp.eq.s32.totalorder %s24, 0
      %p267 = por %p265, %p266
      %p268 = scmp.ne.s32.totalorder %s254, %s255
      %p269 = scmp.eq.s32.totalorder %s25, 3
      %p270 = por %p268, %p269
      %p272 = scmp.ne.s32.totalorder %s255, %s271
      %p273 = scmp.eq.s32.totalorder %s25, 0
      %p274 = por %p272, %p273
      %p275 = scmp.le.s32.totalorder 1, %s19
      %p276 = scmp.lt.s32.totalorder %s19, 5
      %p277 = pnand %p275, %p276
      %p278 = pneg %p277
      // Predicated region
      $region9: #{transformer_blocks_forward.1} parent=5 // pred_check
        _
      $region10: #{transformer_blocks_forward.1} parent=5 // pred_check_branch
        %280 = sbr.rel (%p277) target = $region12
      $region11: #{transformer_blocks_forward.1} parent=5 // pred_region
        %s281 = ssub.s32 %s19, 1
        // Predicated region
        $region13: #{transformer_blocks_forward.1} parent=11 // pred_check
          %p282 = pneg %p57
        $region14: #{transformer_blocks_forward.1} parent=11 // pred_check_branch
          %284 = sbr.rel (%p282) target = $region16
        $region15: #{transformer_blocks_forward.1} parent=11 // pred_region
          %s285 = smul.u32 2, %s28
          %p286 = scmp.lt.s32.totalorder %s285, 1
          %s287 = scalar_select %p286, %s285, 1
          %s288 = smul.addr %s287, 8
          %s289 = scalar_lea.vmem %s0, %s288
          %s290 = smul.u32 2, %s28
        $region16: #{transformer_blocks_forward.1} parent=11 // pred_fallthru
          _
      $region12: #{transformer_blocks_forward.1} parent=5 // pred_fallthru
        _
      %p291 = scmp.lt.s32.totalorder %s19, 4
      // Predicated region
      $region17: #{transformer_blocks_forward.1} parent=5 // pred_check
        %p292 = pneg %p291
      $region18: #{transformer_blocks_forward.1} parent=5 // pred_check_branch
        %294 = sbr.rel (%p292) target = $region20
      $region19: #{transformer_blocks_forward.1} parent=5 // pred_region
        // Predicated region
        $region21: #{transformer_blocks_forward.1} parent=19 // pred_check
          %p295 = pneg %p77
        $region22: #{transformer_blocks_forward.1} parent=19 // pred_check_branch
          %297 = sbr.rel (%p295) target = $region24
        $region23: #{transformer_blocks_forward.1} parent=19 // pred_region
          %p298 = scmp.lt.s32.totalorder %s27, 3
          %s299 = scalar_select %p298, %s27, 3
          %s300 = smul.addr %s299, 2
          %s301 = smul.addr %s300, 8
          %s302 = scalar_lea.vmem %s1, %s301
        $region24: #{transformer_blocks_forward.1} parent=19 // pred_fallthru
          _
        // Predicated region
        $region25: #{transformer_blocks_forward.1} parent=19 // pred_check
          %p303 = pneg %p103
        $region26: #{transformer_blocks_forward.1} parent=19 // pred_check_branch
          %305 = sbr.rel (%p303) target = $region28
        $region27: #{transformer_blocks_forward.1} parent=19 // pred_region
          %p306 = scmp.lt.s32.totalorder %s27, 3
          %s307 = scalar_select %p306, %s27, 3
          %s308 = scalar_lea.vmem %s2, %s307
        $region28: #{transformer_blocks_forward.1} parent=19 // pred_fallthru
          _
        // Predicated region
        $region29: #{transformer_blocks_forward.1} parent=19 // pred_check
          %p309 = pneg %p129
        $region30: #{transformer_blocks_forward.1} parent=19 // pred_check_branch
          %311 = sbr.rel (%p309) target = $region32
        $region31: #{transformer_blocks_forward.1} parent=19 // pred_region
          %p312 = scmp.lt.s32.totalorder %s27, 3
          %s313 = scalar_select %p312, %s27, 3
          %s314 = smul.addr %s313, 4
          %s315 = smul.addr %s314, 4
          %s316 = scalar_lea.vmem %s3, %s315
        $region32: #{transformer_blocks_forward.1} parent=19 // pred_fallthru
          _
        // Predicated region
        $region33: #{transformer_blocks_forward.1} parent=19 // pred_check
          %p317 = pneg %p155
        $region34: #{transformer_blocks_forward.1} parent=19 // pred_check_branch
          %319 = sbr.rel (%p317) target = $region36
        $region35: #{transformer_blocks_forward.1} parent=19 // pred_region
          %p320 = scmp.lt.s32.totalorder %s27, 3
          %s321 = scalar_select %p320, %s27, 3
          %s322 = smul.addr %s321, 4
          %s323 = smul.addr %s322, 4
          %s324 = scalar_lea.vmem %s4, %s323
        $region36: #{transformer_blocks_forward.1} parent=19 // pred_fallthru
          _
        // Predicated region
        $region37: #{transformer_blocks_forward.1} parent=19 // pred_check
          %p325 = pneg %p181
        $region38: #{transformer_blocks_forward.1} parent=19 // pred_check_branch
          %327 = sbr.rel (%p325) target = $region40
        $region39: #{transformer_blocks_forward.1} parent=19 // pred_region
          %p328 = scmp.lt.s32.totalorder %s27, 3
          %s329 = scalar_select %p328, %s27, 3
          %s330 = smul.addr %s329, 4
          %s331 = smul.addr %s330, 4
          %s332 = scalar_lea.vmem %s5, %s331
        $region40: #{transformer_blocks_forward.1} parent=19 // pred_fallthru
          _
        // Predicated region
        $region41: #{transformer_blocks_forward.1} parent=19 // pred_check
          %p333 = pneg %p207
        $region42: #{transformer_blocks_forward.1} parent=19 // pred_check_branch
          %335 = sbr.rel (%p333) target = $region44
        $region43: #{transformer_blocks_forward.1} parent=19 // pred_region
          %p336 = scmp.lt.s32.totalorder %s27, 3
          %s337 = scalar_select %p336, %s27, 3
          %s338 = smul.addr %s337, 8
          %s339 = smul.addr %s338, 4
          %s340 = scalar_lea.vmem %s6, %s339
        $region44: #{transformer_blocks_forward.1} parent=19 // pred_fallthru
          _
      $region20: #{transformer_blocks_forward.1} parent=5 // pred_fallthru
        _
      %p341 = scmp.le.s32.totalorder 1, %s19
      %p342 = scmp.lt.s32.totalorder %s19, 5
      %p343 = pnand %p341, %p342
      %p344 = pneg %p343
      // Predicated region
      $region45: #{transformer_blocks_forward.1} parent=5 // pred_check
        _
      $region46: #{transformer_blocks_forward.1} parent=5 // pred_check_branch
        %346 = sbr.rel (%p343) target = $region48
      $region47: #{transformer_blocks_forward.1} parent=5 // pred_region
        %s347 = ssub.s32 %s19, 1
        %s348 = smul.u32 2, %s28
        %p349 = scmp.lt.s32.totalorder %s348, 1
        %s350 = scalar_select %p349, %s348, 1
        %s351 = smul.addr %s350, 8
        %s352 = scalar_lea.vmem %s0, %s351
        %p353 = pneg %p57
        %p354 = pneg %p54
        %p355 = scmp.lt.s32.totalorder %s29, 3
        %s356 = scalar_select %p355, %s29, 3
        %s357 = smul.addr %s356, 2
        %s358 = smul.addr %s357, 8
        %s359 = scalar_lea.vmem %s1, %s358
        %p360 = pneg %p83
        %p361 = pneg %p80
        %p362 = scmp.lt.s32.totalorder %s29, 3
        %s363 = scalar_select %p362, %s29, 3
        %s364 = scalar_lea.vmem %s2, %s363
        %p365 = pneg %p109
        %p366 = pneg %p106
        %p367 = scmp.lt.s32.totalorder %s29, 3
        %s368 = scalar_select %p367, %s29, 3
        %s369 = smul.addr %s368, 4
        %s370 = smul.addr %s369, 4
        %s371 = scalar_lea.vmem %s3, %s370
        %p372 = pneg %p135
        %p373 = pneg %p132
        %p374 = scmp.lt.s32.totalorder %s29, 3
        %s375 = scalar_select %p374, %s29, 3
        %s376 = smul.addr %s375, 4
        %s377 = smul.addr %s376, 4
        %s378 = scalar_lea.vmem %s4, %s377
        %p379 = pneg %p161
        %p380 = pneg %p158
        %p381 = scmp.lt.s32.totalorder %s29, 3
        %s382 = scalar_select %p381, %s29, 3
        %s383 = smul.addr %s382, 4
        %s384 = smul.addr %s383, 4
        %s385 = scalar_lea.vmem %s5, %s384
        %p386 = pneg %p187
        %p387 = pneg %p184
        %p388 = scmp.lt.s32.totalorder %s29, 3
        %s389 = scalar_select %p388, %s29, 3
        %s390 = smul.addr %s389, 8
        %s391 = smul.addr %s390, 4
        %s392 = scalar_lea.vmem %s6, %s391
        %p393 = pneg %p213
        %p394 = pneg %p210
        %p395 = pneg %p239
        %p396 = pneg %p236
        %p397 = pneg %p267
        %p398 = pneg %p264
        %s399 = sand.u32 %s254, 1
        %s400 = scalar_lea.sflag [#allocation6], %s399
        %s401 = sand.u32 %s254, 1
        %s402 = smul.addr %s401, 16
        %s403 = scalar_lea.vmem [#allocation5], %s402
        %s404 = smul.u32 2, %s28
        %p405 = scmp.lt.s32.totalorder %s404, 1
        %s406 = scalar_select %p405, %s404, 1
        %s407 = smul.addr %s406, 8
        %s408 = scalar_lea.vmem %s0, %s407
        %s409 = smul.u32 2, %s28
        %p410 = scmp.lt.s32.totalorder %s29, 3
        %s411 = scalar_select %p410, %s29, 3
        %s412 = smul.addr %s411, 2
        %s413 = smul.addr %s412, 8
        %s414 = scalar_lea.vmem %s1, %s413
        %p415 = scmp.lt.s32.totalorder %s29, 3
        %s416 = scalar_select %p415, %s29, 3
        %s417 = scalar_lea.vmem %s2, %s416
        %p418 = scmp.lt.s32.totalorder %s29, 3
        %s419 = scalar_select %p418, %s29, 3
        %s420 = smul.addr %s419, 4
        %s421 = smul.addr %s420, 4
        %s422 = scalar_lea.vmem %s3, %s421
        %p423 = scmp.lt.s32.totalorder %s29, 3
        %s424 = scalar_select %p423, %s29, 3
        %s425 = smul.addr %s424, 4
        %s426 = smul.addr %s425, 4
        %s427 = scalar_lea.vmem %s4, %s426
        %p428 = scmp.lt.s32.totalorder %s29, 3
        %s429 = scalar_select %p428, %s29, 3
        %s430 = smul.addr %s429, 4
        %s431 = smul.addr %s430, 4
        %s432 = scalar_lea.vmem %s5, %s431
        %p433 = scmp.lt.s32.totalorder %s29, 3
        %s434 = scalar_select %p433, %s29, 3
        %s435 = smul.addr %s434, 8
        %s436 = smul.addr %s435, 4
        %s437 = scalar_lea.vmem %s6, %s436
        %s438 = smul.u32 2, %s28
        %s439 = smul.u32 2, %s28
        %p441 = scmp.eq.s32.totalorder %s29, 0
        // Predicated region
        $region49: #{transformer_blocks_forward.1} parent=47 // pred_check
          %p442 = pneg %p441
        $region50: #{transformer_blocks_forward.1} parent=47 // pred_check_branch
          %444 = sbr.rel (%p442) target = $region52
        $region51: #{transformer_blocks_forward.1} parent=47 // pred_region
          %v445 = vld [vmem:[%s408] sm:$0xff]
          %v446 = vld [vmem:[%s408 + $0x8] sm:$0xff]
          %vm447 = vcmask 261120
          %448 = vst.msk [vmem:[#allocation2] sm:$0xff] %vm447, %v445
          %449 = vst.msk [vmem:[#allocation2 + $0x8] sm:$0xff] %vm447, %v446
        $region52: #{transformer_blocks_forward.1} parent=47 // pred_fallthru
          _
        %v450 = vld [vmem:[#allocation2] sm:$0xff]
        %v451 = vld [vmem:[#allocation2 + $0x8] sm:$0xff]
        %vm452 = vcmask 261120
        %453 = vst.msk [vmem:[%s403] sm:$0xff] %vm452, %v450
        %454 = vst.msk [vmem:[%s403 + $0x8] sm:$0xff] %vm452, %v451
        %v455 = vld [vmem:[%s414] sm:$0xff]
        %v456 = vld [vmem:[%s414 + $0x8] sm:$0x1]
        %v457 = vsel %vm452, %v450, 0.0
        %458 = vadd.xlane.f32.xlu0 %v457
        %v459 = vpop.xlane.xlu0 %458
        %v460 = vsel %vm452, %v451, 0.0
        %461 = vadd.xlane.f32.xlu0 %v460
        %v462 = vpop.xlane.xlu0 %461
        %v463 = vrcp.pop 32.0
        %v464 = vmul.f32 %v459, %v463
        %v465 = vmul.f32 %v462, %v463
        %v466 = vsub.f32 %v450, %v464
        %v467 = vsub.f32 %v451, %v465
        %v468 = vmul.f32 %v466, %v466
        %v469 = vmul.f32 %v467, %v467
        %v470 = vsel %vm452, %v468, 0.0
        %471 = vadd.xlane.f32.xlu0 %v470
        %v472 = vpop.xlane.xlu0 %471
        %v473 = vsel %vm452, %v469, 0.0
        %474 = vadd.xlane.f32.xlu0 %v473
        %v475 = vpop.xlane.xlu0 %474
        %v476 = vmul.f32 %v472, %v463
        %v477 = vmul.f32 %v475, %v463
        %v478 = vadd.f32 %v476, 1e-05
        %v479 = vadd.f32 %v477, 1e-05
        %v480 = vrsqrt.pop %v478
        %v481 = vrsqrt.pop %v479
        %v482 = vmul.f32 %v466, %v480
        %v483 = vmul.f32 %v467, %v481
        %v484 = vlaneseq
        %v485 = vshrl.u32 %v484, 7
        %v486 = vsub.s32 0, %v485
        %v487 = vrot.slane %v455, %v486
        %v488 = vmul.f32 %v482, %v487
        %v489 = vmul.f32 %v483, %v487
        %v490 = vlaneseq
        %v491 = vshrl.u32 %v490, 7
        %v492 = vsub.s32 1, %v491
        %v493 = vrot.slane %v455, %v492
        %v494 = vadd.f32 %v488, %v493
        %v495 = vadd.f32 %v489, %v493
        %v496 = vpack.c.bf16 %v494, %v494
        %v497 = vpack.c.bf16 %v495, %v495
        %v498 = vld [vmem:[%s422] sm:$0xf]
        %v499 = vld [vmem:[%s422 + $0x4] sm:$0xf]
        %v500 = vld [vmem:[%s422 + $0x8] sm:$0xf]
        %v501 = vld [vmem:[%s422 + $0xc] sm:$0xf]
        %v504 = vunpack.c.l.b16 %v496
        %v505 = vunpack.c.l.b16 %v497
        %v506 = vpack.c.b16 %v505, %v504
        %v511 = vunpack.c.l.b16 %v498
        %v512 = vunpack.c.l.b16 %v499
        %v513 = vunpack.c.l.b16 %v500
        %v514 = vunpack.c.l.b16 %v501
        %v515 = vpack.c.b16 %v512, %v511
        %v516 = vpack.c.b16 %v514, %v513
        %v520 = vsel %vm452, %v506, 0
        %522 = vmatprep.subr.bf16.mxu0 0
        %523 = vmatpush1.bf16.msra.mxu0 %v515
        %524 = vmatprep.subr.bf16.mxu0 0
        %525 = vmatpush1.bf16.msra.mxu0 %v516
        %526 = vmatprep.subr.bf16.mxu0 0
        %527 = vmatpush1.bf16.msra.mxu0 0
        %528 = vmatprep.subr.bf16.mxu0 0
        %529 = vmatpush1.bf16.msra.mxu0 0
        %530 = vmatprep.subr.bf16.mxu0 0
        %531 = vmatpush1.bf16.msra.mxu0 0
        %532 = vmatprep.subr.bf16.mxu0 0
        %533 = vmatpush1.bf16.msra.mxu0 0
        %534 = vmatprep.subr.bf16.mxu0 0
        %535 = vmatpush1.bf16.msra.mxu0 0
        %536 = vmatprep.subr.bf16.mxu0 0
        %537 = vmatpush1.bf16.msra.mxu0 0
        %538 = vmatprep.subr.bf16.mxu0 0
        %539 = vmatpush1.bf16.msra.mxu0 0
        %540 = vmatprep.subr.bf16.mxu0 0
        %541 = vmatpush1.bf16.msra.mxu0 0
        %542 = vmatprep.subr.bf16.mxu0 0
        %543 = vmatpush1.bf16.msra.mxu0 0
        %544 = vmatprep.subr.bf16.mxu0 0
        %545 = vmatpush1.bf16.msra.mxu0 0
        %546 = vmatprep.subr.bf16.mxu0 0
        %547 = vmatpush1.bf16.msra.mxu0 0
        %548 = vmatprep.subr.bf16.mxu0 0
        %549 = vmatpush1.bf16.msra.mxu0 0
        %550 = vmatprep.subr.bf16.mxu0 0
        %551 = vmatpush1.bf16.msra.mxu0 0
        %552 = vmatprep.subr.bf16.mxu0 0
        %553 = vmatpush1.bf16.msra.mxu0 0
        %554 = vmatprep.mubr.bf16.mxu0 0
        %555 = vmatmul.mubr.bf16.gmra.mrb[0].mxu0 %v520
        %v556 = vpop.f32.mrb[0].mxu0
        %v557 = vadd.f32 0.0, %v556
        %v558 = vpop.f32.mrb[0].mxu0
        %v559 = vpop.f32.mrb[0].mxu0
        %v560 = vadd.f32 0.0, %v559
        %v561 = vpop.f32.mrb[0].mxu0
        %562 = vdwg.mxu0
        %v563 = vlaneseq
        %v564 = vshrl.u32 %v563, 7
        %v565 = vsub.s32 2, %v564
        %v566 = vrot.slane %v455, %v565
        %v567 = vadd.f32 %v557, %v566
        %v568 = vadd.f32 %v560, %v566
        %v569 = vlaneseq
        %v570 = vshrl.u32 %v569, 7
        %v571 = vsub.s32 3, %v570
        %v572 = vrot.slane %v455, %v571
        %574 = vrot.lane.b32.xlu0 %v572, 32
        %v575 = vpop.permute.xlu0 %574
        %v577 = vadd.f32 %v557, %v575
        %v578 = vadd.f32 %v560, %v575
        %v579 = vlaneseq
        %v580 = vshrl.u32 %v579, 7
        %v581 = vsub.s32 4, %v580
        %v582 = vrot.slane %v455, %v581
        %584 = vrot.lane.b32.xlu0 %v582, 64
        %v585 = vpop.permute.xlu0 %584
        %v587 = vadd.f32 %v557, %v585
        %v588 = vadd.f32 %v560, %v585
        %v589 = vpack.c.bf16 %v567, %v567
        %v590 = vpack.c.bf16 %v568, %v568
        %v591 = vpack.c.bf16 %v577, %v577
        %v592 = vpack.c.bf16 %v578, %v578
        %v593 = vpack.c.bf16 %v587, %v587
        %v594 = vpack.c.bf16 %v588, %v588
        %596 = vrot.lane.b32.xlu0 %v591, 96
        %v597 = vpop.permute.xlu0 %596
        %vm598 = vcmask 130048
        %v600 = vsel %vm598, %v589, 0
        %v603 = vsel %vm598, %v597, 0
        %605 = vmatprep.subr.bf16.mxu0 0
        %606 = vmatpush1.bf16.xpose.msra.mxu0 %v603
        %607 = vmatprep.subr.bf16.mxu0 0
        %608 = vmatpush1.bf16.xpose.msra.mxu0 0
        %609 = vmatprep.subr.bf16.mxu0 0
        %610 = vmatpush1.bf16.xpose.msra.mxu0 0
        %611 = vmatprep.subr.bf16.mxu0 0
        %612 = vmatpush1.bf16.xpose.msra.mxu0 0
        %613 = vmatprep.subr.bf16.mxu0 0
        %614 = vmatpush1.bf16.xpose.msra.mxu0 0
        %615 = vmatprep.subr.bf16.mxu0 0
        %616 = vmatpush1.bf16.xpose.msra.mxu0 0
        %617 = vmatprep.subr.bf16.mxu0 0
        %618 = vmatpush1.bf16.xpose.msra.mxu0 0
        %619 = vmatprep.subr.bf16.mxu0 0
        %620 = vmatpush1.bf16.xpose.msra.mxu0 0
        %621 = vmatprep.subr.bf16.mxu0 0
        %622 = vmatpush1.bf16.xpose.msra.mxu0 0
        %623 = vmatprep.subr.bf16.mxu0 0
        %624 = vmatpush1.bf16.xpose.msra.mxu0 0
        %625 = vmatprep.subr.bf16.mxu0 0
        %626 = vmatpush1.bf16.xpose.msra.mxu0 0
        %627 = vmatprep.subr.bf16.mxu0 0
        %628 = vmatpush1.bf16.xpose.msra.mxu0 0
        %629 = vmatprep.subr.bf16.mxu0 0
        %630 = vmatpush1.bf16.xpose.msra.mxu0 0
        %631 = vmatprep.subr.bf16.mxu0 0
        %632 = vmatpush1.bf16.xpose.msra.mxu0 0
        %633 = vmatprep.subr.bf16.mxu0 0
        %634 = vmatpush1.bf16.xpose.msra.mxu0 0
        %635 = vmatprep.subr.bf16.mxu0 0
        %636 = vmatpush1.bf16.xpose.msra.mxu0 0
        %637 = vmatprep.mubr.bf16.mxu0 0
        %638 = vmatmul.mubr.bf16.gmra.mrb[0].mxu0 %v600
        %v639 = vpop.f32.mrb[0].mxu0
        %v640 = vadd.f32 0.0, %v639
        %v641 = vpop.f32.mrb[0].mxu0
        %v642 = vpop.f32.mrb[0].mxu0
        %v643 = vpop.f32.mrb[0].mxu0
        %644 = vdwg.mxu0
        %646 = vrot.lane.b32.xlu0 %v592, 96
        %v647 = vpop.permute.xlu0 %646
        %v649 = vsel %vm598, %v590, 0
        %v652 = vsel %vm598, %v647, 0
        %654 = vmatprep.subr.bf16.mxu0 0
        %655 = vmatpush1.bf16.xpose.msra.mxu0 %v652
        %656 = vmatprep.subr.bf16.mxu0 0
        %657 = vmatpush1.bf16.xpose.msra.mxu0 0
        %658 = vmatprep.subr.bf16.mxu0 0
        %659 = vmatpush1.bf16.xpose.msra.mxu0 0
        %660 = vmatprep.subr.bf16.mxu0 0
        %661 = vmatpush1.bf16.xpose.msra.mxu0 0
        %662 = vmatprep.subr.bf16.mxu0 0
        %663 = vmatpush1.bf16.xpose.msra.mxu0 0
        %664 = vmatprep.subr.bf16.mxu0 0
        %665 = vmatpush1.bf16.xpose.msra.mxu0 0
        %666 = vmatprep.subr.bf16.mxu0 0
        %667 = vmatpush1.bf16.xpose.msra.mxu0 0
        %668 = vmatprep.subr.bf16.mxu0 0
        %669 = vmatpush1.bf16.xpose.msra.mxu0 0
        %670 = vmatprep.subr.bf16.mxu0 0
        %671 = vmatpush1.bf16.xpose.msra.mxu0 0
        %672 = vmatprep.subr.bf16.mxu0 0
        %673 = vmatpush1.bf16.xpose.msra.mxu0 0
        %674 = vmatprep.subr.bf16.mxu0 0
        %675 = vmatpush1.bf16.xpose.msra.mxu0 0
        %676 = vmatprep.subr.bf16.mxu0 0
        %677 = vmatpush1.bf16.xpose.msra.mxu0 0
        %678 = vmatprep.subr.bf16.mxu0 0
        %679 = vmatpush1.bf16.xpose.msra.mxu0 0
        %680 = vmatprep.subr.bf16.mxu0 0
        %681 = vmatpush1.bf16.xpose.msra.mxu0 0
        %682 = vmatprep.subr.bf16.mxu0 0
        %683 = vmatpush1.bf16.xpose.msra.mxu0 0
        %684 = vmatprep.subr.bf16.mxu0 0
        %685 = vmatpush1.bf16.xpose.msra.mxu0 0
        %686 = vmatprep.mubr.bf16.mxu0 0
        %687 = vmatmul.mubr.bf16.gmra.mrb[0].mxu0 %v649
        %v688 = vpop.f32.mrb[0].mxu0
        %v689 = vadd.f32 0.0, %v688
        %v690 = vpop.f32.mrb[0].mxu0
        %v691 = vpop.f32.mrb[0].mxu0
        %v692 = vpop.f32.mrb[0].mxu0
        %693 = vdwg.mxu0
        %vm694 = vcmask 64512
        %v695 = vsel %vm694, %v640, -inf
        %696 = vmax.xlane.f32.xlu0 %v695
        %v697 = vpop.xlane.xlu0 %696
        %v698 = vsel %vm694, %v689, -inf
        %699 = vmax.xlane.f32.xlu0 %v698
        %v700 = vpop.xlane.xlu0 %699
        %v701 = vsub.f32 %v640, %v697
        %v702 = vsub.f32 %v689, %v700
        %v703 = vmul.f32 %v701, 1.442695
        %v704 = vpow.pop %v703
        %v705 = vmul.f32 %v702, 1.442695
        %v706 = vpow.pop %v705
        %v707 = vsel %vm694, %v704, 0.0
        %708 = vadd.xlane.f32.xlu0 %v707
        %v709 = vpop.xlane.xlu0 %708
        %v710 = vsel %vm694, %v706, 0.0
        %711 = vadd.xlane.f32.xlu0 %v710
        %v712 = vpop.xlane.xlu0 %711
        %v713 = vrcp.pop %v709
        %v714 = vrcp.pop %v712
        %v715 = vmul.f32 %v704, %v713
        %v716 = vmul.f32 %v706, %v714
        %v717 = vpack.c.bf16 %v715, %v715
        %v718 = vpack.c.bf16 %v716, %v716
        %720 = vrot.lane.b32.xlu0 %v593, 64
        %v721 = vpop.permute.xlu0 %720
        %v723 = vsel %vm694, %v717, 0
        %vm725 = vcmask 1043456
        %v727 = vsel %vm725, %v721, 0
        %729 = vmatprep.subr.bf16.mxu0 0
        %730 = vmatpush1.bf16.msra.mxu0 %v727
        %731 = vmatprep.subr.bf16.mxu0 0
        %732 = vmatpush1.bf16.msra.mxu0 0
        %733 = vmatprep.subr.bf16.mxu0 0
        %734 = vmatpush1.bf16.msra.mxu0 0
        %735 = vmatprep.subr.bf16.mxu0 0
        %736 = vmatpush1.bf16.msra.mxu0 0
        %737 = vmatprep.subr.bf16.mxu0 0
        %738 = vmatpush1.bf16.msra.mxu0 0
        %739 = vmatprep.subr.bf16.mxu0 0
        %740 = vmatpush1.bf16.msra.mxu0 0
        %741 = vmatprep.subr.bf16.mxu0 0
        %742 = vmatpush1.bf16.msra.mxu0 0
        %743 = vmatprep.subr.bf16.mxu0 0
        %744 = vmatpush1.bf16.msra.mxu0 0
        %745 = vmatprep.subr.bf16.mxu0 0
        %746 = vmatpush1.bf16.msra.mxu0 0
        %747 = vmatprep.subr.bf16.mxu0 0
        %748 = vmatpush1.bf16.msra.mxu0 0
        %749 = vmatprep.subr.bf16.mxu0 0
        %750 = vmatpush1.bf16.msra.mxu0 0
        %751 = vmatprep.subr.bf16.mxu0 0
        %752 = vmatpush1.bf16.msra.mxu0 0
        %753 = vmatprep.subr.bf16.mxu0 0
        %754 = vmatpush1.bf16.msra.mxu0 0
        %755 = vmatprep.subr.bf16.mxu0 0
        %756 = vmatpush1.bf16.msra.mxu0 0
        %757 = vmatprep.subr.bf16.mxu0 0
        %758 = vmatpush1.bf16.msra.mxu0 0
        %759 = vmatprep.subr.bf16.mxu0 0
        %760 = vmatpush1.bf16.msra.mxu0 0
        %761 = vmatprep.mubr.bf16.mxu0 0
        %762 = vmatmul.mubr.bf16.gmra.mrb[0].mxu0 %v723
        %v763 = vpop.f32.mrb[0].mxu0
        %v764 = vadd.f32 0.0, %v763
        %v765 = vpop.f32.mrb[0].mxu0
        %v766 = vpop.f32.mrb[0].mxu0
        %v767 = vpop.f32.mrb[0].mxu0
        %768 = vdwg.mxu0
        %770 = vrot.lane.b32.xlu0 %v594, 64
        %v771 = vpop.permute.xlu0 %770
        %v773 = vsel %vm694, %v718, 0
        %v776 = vsel %vm725, %v771, 0
        %778 = vmatprep.subr.bf16.mxu0 0
        %779 = vmatpush1.bf16.msra.mxu0 %v776
        %780 = vmatprep.subr.bf16.mxu0 0
        %781 = vmatpush1.bf16.msra.mxu0 0
        %782 = vmatprep.subr.bf16.mxu0 0
        %783 = vmatpush1.bf16.msra.mxu0 0
        %784 = vmatprep.subr.bf16.mxu0 0
        %785 = vmatpush1.bf16.msra.mxu0 0
        %786 = vmatprep.subr.bf16.mxu0 0
        %787 = vmatpush1.bf16.msra.mxu0 0
        %788 = vmatprep.subr.bf16.mxu0 0
        %789 = vmatpush1.bf16.msra.mxu0 0
        %790 = vmatprep.subr.bf16.mxu0 0
        %791 = vmatpush1.bf16.msra.mxu0 0
        %792 = vmatprep.subr.bf16.mxu0 0
        %793 = vmatpush1.bf16.msra.mxu0 0
        %794 = vmatprep.subr.bf16.mxu0 0
        %795 = vmatpush1.bf16.msra.mxu0 0
        %796 = vmatprep.subr.bf16.mxu0 0
        %797 = vmatpush1.bf16.msra.mxu0 0
        %798 = vmatprep.subr.bf16.mxu0 0
        %799 = vmatpush1.bf16.msra.mxu0 0
        %800 = vmatprep.subr.bf16.mxu0 0
        %801 = vmatpush1.bf16.msra.mxu0 0
        %802 = vmatprep.subr.bf16.mxu0 0
        %803 = vmatpush1.bf16.msra.mxu0 0
        %804 = vmatprep.subr.bf16.mxu0 0
        %805 = vmatpush1.bf16.msra.mxu0 0
        %806 = vmatprep.subr.bf16.mxu0 0
        %807 = vmatpush1.bf16.msra.mxu0 0
        %808 = vmatprep.subr.bf16.mxu0 0
        %809 = vmatpush1.bf16.msra.mxu0 0
        %810 = vmatprep.mubr.bf16.mxu0 0
        %811 = vmatmul.mubr.bf16.gmra.mrb[0].mxu0 %v773
        %v812 = vpop.f32.mrb[0].mxu0
        %v813 = vadd.f32 0.0, %v812
        %v814 = vpop.f32.mrb[0].mxu0
        %v815 = vpop.f32.mrb[0].mxu0
        %v816 = vpop.f32.mrb[0].mxu0
        %817 = vdwg.mxu0
        %v818 = vpack.c.bf16 %v764, %v764
        %v819 = vpack.c.bf16 %v813, %v813
        %821 = vrot.lane.b32.xlu0 %v589, 112
        %v822 = vpop.permute.xlu0 %821
        %823 = vrot.lane.b32.xlu0 %v591, 80
        %v824 = vpop.permute.xlu0 %823
        %v826 = vsel %vm598, %v822, 0
        %v829 = vsel %vm598, %v824, 0
        %831 = vmatprep.subr.bf16.mxu0 0
        %832 = vmatpush1.bf16.xpose.msra.mxu0 %v829
        %833 = vmatprep.subr.bf16.mxu0 0
        %834 = vmatpush1.bf16.xpose.msra.mxu0 0
        %835 = vmatprep.subr.bf16.mxu0 0
        %836 = vmatpush1.bf16.xpose.msra.mxu0 0
        %837 = vmatprep.subr.bf16.mxu0 0
        %838 = vmatpush1.bf16.xpose.msra.mxu0 0
        %839 = vmatprep.subr.bf16.mxu0 0
        %840 = vmatpush1.bf16.xpose.msra.mxu0 0
        %841 = vmatprep.subr.bf16.mxu0 0
        %842 = vmatpush1.bf16.xpose.msra.mxu0 0
        %843 = vmatprep.subr.bf16.mxu0 0
        %844 = vmatpush1.bf16.xpose.msra.mxu0 0
        %845 = vmatprep.subr.bf16.mxu0 0
        %846 = vmatpush1.bf16.xpose.msra.mxu0 0
        %847 = vmatprep.subr.bf16.mxu0 0
        %848 = vmatpush1.bf16.xpose.msra.mxu0 0
        %849 = vmatprep.subr.bf16.mxu0 0
        %850 = vmatpush1.bf16.xpose.msra.mxu0 0
        %851 = vmatprep.subr.bf16.mxu0 0
        %852 = vmatpush1.bf16.xpose.msra.mxu0 0
        %853 = vmatprep.subr.bf16.mxu0 0
        %854 = vmatpush1.bf16.xpose.msra.mxu0 0
        %855 = vmatprep.subr.bf16.mxu0 0
        %856 = vmatpush1.bf16.xpose.msra.mxu0 0
        %857 = vmatprep.subr.bf16.mxu0 0
        %858 = vmatpush1.bf16.xpose.msra.mxu0 0
        %859 = vmatprep.subr.bf16.mxu0 0
        %860 = vmatpush1.bf16.xpose.msra.mxu0 0
        %861 = vmatprep.subr.bf16.mxu0 0
        %862 = vmatpush1.bf16.xpose.msra.mxu0 0
        %863 = vmatprep.mubr.bf16.mxu0 0
        %864 = vmatmul.mubr.bf16.gmra.mrb[0].mxu0 %v826
        %v865 = vpop.f32.mrb[0].mxu0
        %v866 = vadd.f32 0.0, %v865
        %v867 = vpop.f32.mrb[0].mxu0
        %v868 = vpop.f32.mrb[0].mxu0
        %v869 = vpop.f32.mrb[0].mxu0
        %870 = vdwg.mxu0
        %872 = vrot.lane.b32.xlu0 %v590, 112
        %v873 = vpop.permute.xlu0 %872
        %874 = vrot.lane.b32.xlu0 %v592, 80
        %v875 = vpop.permute.xlu0 %874
        %v877 = vsel %vm598, %v873, 0
        %v880 = vsel %vm598, %v875, 0
        %882 = vmatprep.subr.bf16.mxu0 0
        %883 = vmatpush1.bf16.xpose.msra.mxu0 %v880
        %884 = vmatprep.subr.bf16.mxu0 0
        %885 = vmatpush1.bf16.xpose.msra.mxu0 0
        %886 = vmatprep.subr.bf16.mxu0 0
        %887 = vmatpush1.bf16.xpose.msra.mxu0 0
        %888 = vmatprep.subr.bf16.mxu0 0
        %889 = vmatpush1.bf16.xpose.msra.mxu0 0
        %890 = vmatprep.subr.bf16.mxu0 0
        %891 = vmatpush1.bf16.xpose.msra.mxu0 0
        %892 = vmatprep.subr.bf16.mxu0 0
        %893 = vmatpush1.bf16.xpose.msra.mxu0 0
        %894 = vmatprep.subr.bf16.mxu0 0
        %895 = vmatpush1.bf16.xpose.msra.mxu0 0
        %896 = vmatprep.subr.bf16.mxu0 0
        %897 = vmatpush1.bf16.xpose.msra.mxu0 0
        %898 = vmatprep.subr.bf16.mxu0 0
        %899 = vmatpush1.bf16.xpose.msra.mxu0 0
        %900 = vmatprep.subr.bf16.mxu0 0
        %901 = vmatpush1.bf16.xpose.msra.mxu0 0
        %902 = vmatprep.subr.bf16.mxu0 0
        %903 = vmatpush1.bf16.xpose.msra.mxu0 0
        %904 = vmatprep.subr.bf16.mxu0 0
        %905 = vmatpush1.bf16.xpose.msra.mxu0 0
        %906 = vmatprep.subr.bf16.mxu0 0
        %907 = vmatpush1.bf16.xpose.msra.mxu0 0
        %908 = vmatprep.subr.bf16.mxu0 0
        %909 = vmatpush1.bf16.xpose.msra.mxu0 0
        %910 = vmatprep.subr.bf16.mxu0 0
        %911 = vmatpush1.bf16.xpose.msra.mxu0 0
        %912 = vmatprep.subr.bf16.mxu0 0
        %913 = vmatpush1.bf16.xpose.msra.mxu0 0
        %914 = vmatprep.mubr.bf16.mxu0 0
        %915 = vmatmul.mubr.bf16.gmra.mrb[0].mxu0 %v877
        %v916 = vpop.f32.mrb[0].mxu0
        %v917 = vadd.f32 0.0, %v916
        %v918 = vpop.f32.mrb[0].mxu0
        %v919 = vpop.f32.mrb[0].mxu0
        %v920 = vpop.f32.mrb[0].mxu0
        %921 = vdwg.mxu0
        %v922 = vsel %vm694, %v866, -inf
        %923 = vmax.xlane.f32.xlu0 %v922
        %v924 = vpop.xlane.xlu0 %923
        %v925 = vsel %vm694, %v917, -inf
        %926 = vmax.xlane.f32.xlu0 %v925
        %v927 = vpop.xlane.xlu0 %926
        %v928 = vsub.f32 %v866, %v924
        %v929 = vsub.f32 %v917, %v927
        %v930 = vmul.f32 %v928, 1.442695
        %v931 = vpow.pop %v930
        %v932 = vmul.f32 %v929, 1.442695
        %v933 = vpow.pop %v932
        %v934 = vsel %vm694, %v931, 0.0
        %935 = vadd.xlane.f32.xlu0 %v934
        %v936 = vpop.xlane.xlu0 %935
        %v937 = vsel %vm694, %v933, 0.0
        %938 = vadd.xlane.f32.xlu0 %v937
        %v939 = vpop.xlane.xlu0 %938
        %v940 = vrcp.pop %v936
        %v941 = vrcp.pop %v939
        %v942 = vmul.f32 %v931, %v940
        %v943 = vmul.f32 %v933, %v941
        %v944 = vpack.c.bf16 %v942, %v942
        %v945 = vpack.c.bf16 %v943, %v943
        %946 = vrot.lane.b32.xlu0 %v593, 48
        %v947 = vpop.permute.xlu0 %946
        %v949 = vsel %vm694, %v944, 0
        %v952 = vsel %vm725, %v947, 0
        %954 = vmatprep.subr.bf16.mxu0 0
        %955 = vmatpush1.bf16.msra.mxu0 %v952
        %956 = vmatprep.subr.bf16.mxu0 0
        %957 = vmatpush1.bf16.msra.mxu0 0
        %958 = vmatprep.subr.bf16.mxu0 0
        %959 = vmatpush1.bf16.msra.mxu0 0
        %960 = vmatprep.subr.bf16.mxu0 0
        %961 = vmatpush1.bf16.msra.mxu0 0
        %962 = vmatprep.subr.bf16.mxu0 0
        %963 = vmatpush1.bf16.msra.mxu0 0
        %964 = vmatprep.subr.bf16.mxu0 0
        %965 = vmatpush1.bf16.msra.mxu0 0
        %966 = vmatprep.subr.bf16.mxu0 0
        %967 = vmatpush1.bf16.msra.mxu0 0
        %968 = vmatprep.subr.bf16.mxu0 0
        %969 = vmatpush1.bf16.msra.mxu0 0
        %970 = vmatprep.subr.bf16.mxu0 0
        %971 = vmatpush1.bf16.msra.mxu0 0
        %972 = vmatprep.subr.bf16.mxu0 0
        %973 = vmatpush1.bf16.msra.mxu0 0
        %974 = vmatprep.subr.bf16.mxu0 0
        %975 = vmatpush1.bf16.msra.mxu0 0
        %976 = vmatprep.subr.bf16.mxu0 0
        %977 = vmatpush1.bf16.msra.mxu0 0
        %978 = vmatprep.subr.bf16.mxu0 0
        %979 = vmatpush1.bf16.msra.mxu0 0
        %980 = vmatprep.subr.bf16.mxu0 0
        %981 = vmatpush1.bf16.msra.mxu0 0
        %982 = vmatprep.subr.bf16.mxu0 0
        %983 = vmatpush1.bf16.msra.mxu0 0
        %984 = vmatprep.subr.bf16.mxu0 0
        %985 = vmatpush1.bf16.msra.mxu0 0
        %986 = vmatprep.mubr.bf16.mxu0 0
        %987 = vmatmul.mubr.bf16.gmra.mrb[0].mxu0 %v949
        %v988 = vpop.f32.mrb[0].mxu0
        %v989 = vadd.f32 0.0, %v988
        %v990 = vpop.f32.mrb[0].mxu0
        %v991 = vpop.f32.mrb[0].mxu0
        %v992 = vpop.f32.mrb[0].mxu0
        %993 = vdwg.mxu0
        %994 = vrot.lane.b32.xlu0 %v594, 48
        %v995 = vpop.permute.xlu0 %994
        %v997 = vsel %vm694, %v945, 0
        %v1000 = vsel %vm725, %v995, 0
        %1002 = vmatprep.subr.bf16.mxu0 0
        %1003 = vmatpush1.bf16.msra.mxu0 %v1000
        %1004 = vmatprep.subr.bf16.mxu0 0
        %1005 = vmatpush1.bf16.msra.mxu0 0
        %1006 = vmatprep.subr.bf16.mxu0 0
        %1007 = vmatpush1.bf16.msra.mxu0 0
        %1008 = vmatprep.subr.bf16.mxu0 0
        %1009 = vmatpush1.bf16.msra.mxu0 0
        %1010 = vmatprep.subr.bf16.mxu0 0
        %1011 = vmatpush1.bf16.msra.mxu0 0
        %1012 = vmatprep.subr.bf16.mxu0 0
        %1013 = vmatpush1.bf16.msra.mxu0 0
        %1014 = vmatprep.subr.bf16.mxu0 0
        %1015 = vmatpush1.bf16.msra.mxu0 0
        %1016 = vmatprep.subr.bf16.mxu0 0
        %1017 = vmatpush1.bf16.msra.mxu0 0
        %1018 = vmatprep.subr.bf16.mxu0 0
        %1019 = vmatpush1.bf16.msra.mxu0 0
        %1020 = vmatprep.subr.bf16.mxu0 0
        %1021 = vmatpush1.bf16.msra.mxu0 0
        %1022 = vmatprep.subr.bf16.mxu0 0
        %1023 = vmatpush1.bf16.msra.mxu0 0
        %1024 = vmatprep.subr.bf16.mxu0 0
        %1025 = vmatpush1.bf16.msra.mxu0 0
        %1026 = vmatprep.subr.bf16.mxu0 0
        %1027 = vmatpush1.bf16.msra.mxu0 0
        %1028 = vmatprep.subr.bf16.mxu0 0
        %1029 = vmatpush1.bf16.msra.mxu0 0
        %1030 = vmatprep.subr.bf16.mxu0 0
        %1031 = vmatpush1.bf16.msra.mxu0 0
        %1032 = vmatprep.subr.bf16.mxu0 0
        %1033 = vmatpush1.bf16.msra.mxu0 0
        %1034 = vmatprep.mubr.bf16.mxu0 0
        %1035 = vmatmul.mubr.bf16.gmra.mrb[0].mxu0 %v997
        %v1036 = vpop.f32.mrb[0].mxu0
        %v1037 = vadd.f32 0.0, %v1036
        %v1038 = vpop.f32.mrb[0].mxu0
        %v1039 = vpop.f32.mrb[0].mxu0
        %v1040 = vpop.f32.mrb[0].mxu0
        %1041 = vdwg.mxu0
        %v1042 = vpack.c.bf16 %v989, %v989
        %v1043 = vpack.c.bf16 %v1037, %v1037
        %1046 = vrot.lane.b32.xlu0 %v1042, 16
        %v1047 = vpop.permute.xlu0 %1046
        %1048 = vrot.lane.b32.xlu0 %v1043, 16
        %v1049 = vpop.permute.xlu0 %1048
        %v1052 = vsel %vm598, %v818, %v1047
        %v1055 = vsel %vm598, %v819, %v1049
        %v1056 = vld [vmem:[%s427] sm:$0xf]
        %v1057 = vld [vmem:[%s427 + $0x4] sm:$0xf]
        %v1058 = vld [vmem:[%s427 + $0x8] sm:$0xf]
        %v1059 = vld [vmem:[%s427 + $0xc] sm:$0xf]
        %v1060 = vlaneseq
        %v1061 = vshrl.u32 %v1060, 7
        %v1062 = vsub.s32 5, %v1061
        %v1063 = vrot.slane %v455, %v1062
        %v1066 = vunpack.c.l.b16 %v1052
        %v1067 = vunpack.c.l.b16 %v1055
        %v1068 = vpack.c.b16 %v1067, %v1066
        %v1073 = vunpack.c.l.b16 %v1056
        %v1074 = vunpack.c.l.b16 %v1057
        %v1075 = vunpack.c.l.b16 %v1058
        %v1076 = vunpack.c.l.b16 %v1059
        %v1077 = vpack.c.b16 %v1074, %v1073
        %v1078 = vpack.c.b16 %v1076, %v1075
        %v1082 = vsel %vm452, %v1068, 0
        %1084 = vmatprep.subr.bf16.mxu0 0
        %1085 = vmatpush1.bf16.msra.mxu0 %v1077
        %1086 = vmatprep.subr.bf16.mxu0 0
        %1087 = vmatpush1.bf16.msra.mxu0 %v1078
        %1088 = vmatprep.subr.bf16.mxu0 0
        %1089 = vmatpush1.bf16.msra.mxu0 0
        %1090 = vmatprep.subr.bf16.mxu0 0
        %1091 = vmatpush1.bf16.msra.mxu0 0
        %1092 = vmatprep.subr.bf16.mxu0 0
        %1093 = vmatpush1.bf16.msra.mxu0 0
        %1094 = vmatprep.subr.bf16.mxu0 0
        %1095 = vmatpush1.bf16.msra.mxu0 0
        %1096 = vmatprep.subr.bf16.mxu0 0
        %1097 = vmatpush1.bf16.msra.mxu0 0
        %1098 = vmatprep.subr.bf16.mxu0 0
        %1099 = vmatpush1.bf16.msra.mxu0 0
        %1100 = vmatprep.subr.bf16.mxu0 0
        %1101 = vmatpush1.bf16.msra.mxu0 0
        %1102 = vmatprep.subr.bf16.mxu0 0
        %1103 = vmatpush1.bf16.msra.mxu0 0
        %1104 = vmatprep.subr.bf16.mxu0 0
        %1105 = vmatpush1.bf16.msra.mxu0 0
        %1106 = vmatprep.subr.bf16.mxu0 0
        %1107 = vmatpush1.bf16.msra.mxu0 0
        %1108 = vmatprep.subr.bf16.mxu0 0
        %1109 = vmatpush1.bf16.msra.mxu0 0
        %1110 = vmatprep.subr.bf16.mxu0 0
        %1111 = vmatpush1.bf16.msra.mxu0 0
        %1112 = vmatprep.subr.bf16.mxu0 0
        %1113 = vmatpush1.bf16.msra.mxu0 0
        %1114 = vmatprep.subr.bf16.mxu0 0
        %1115 = vmatpush1.bf16.msra.mxu0 0
        %1116 = vmatprep.mubr.bf16.mxu0 0
        %1117 = vmatmul.mubr.bf16.gmra.mrb[0].mxu0 %v1082
        %v1118 = vpop.f32.mrb[0].mxu0
        %v1119 = vadd.f32 %v1063, %v1118
        %v1120 = vpop.f32.mrb[0].mxu0
        %v1121 = vpop.f32.mrb[0].mxu0
        %v1122 = vadd.f32 %v1063, %v1121
        %v1123 = vpop.f32.mrb[0].mxu0
        %1124 = vdwg.mxu0
        %v1125 = vadd.f32 %v450, %v1119
        %v1126 = vadd.f32 %v451, %v1122
        %v1127 = vsel %vm452, %v1125, 0.0
        %1128 = vadd.xlane.f32.xlu0 %v1127
        %v1129 = vpop.xlane.xlu0 %1128
        %v1130 = vsel %vm452, %v1126, 0.0
        %1131 = vadd.xlane.f32.xlu0 %v1130
        %v1132 = vpop.xlane.xlu0 %1131
        %v1133 = vmul.f32 %v1129, %v463
        %v1134 = vmul.f32 %v1132, %v463
        %v1135 = vsub.f32 %v1125, %v1133
        %v1136 = vsub.f32 %v1126, %v1134
        %v1137 = vmul.f32 %v1135, %v1135
        %v1138 = vmul.f32 %v1136, %v1136
        %v1139 = vsel %vm452, %v1137, 0.0
        %1140 = vadd.xlane.f32.xlu0 %v1139
        %v1141 = vpop.xlane.xlu0 %1140
        %v1142 = vsel %vm452, %v1138, 0.0
        %1143 = vadd.xlane.f32.xlu0 %v1142
        %v1144 = vpop.xlane.xlu0 %1143
        %v1145 = vmul.f32 %v1141, %v463
        %v1146 = vmul.f32 %v1144, %v463
        %v1147 = vadd.f32 %v1145, 1e-05
        %v1148 = vadd.f32 %v1146, 1e-05
        %v1149 = vrsqrt.pop %v1147
        %v1150 = vrsqrt.pop %v1148
        %v1151 = vmul.f32 %v1135, %v1149
        %v1152 = vmul.f32 %v1136, %v1150
        %v1153 = vlaneseq
        %v1154 = vshrl.u32 %v1153, 7
        %v1155 = vsub.s32 6, %v1154
        %v1156 = vrot.slane %v455, %v1155
        %v1157 = vmul.f32 %v1151, %v1156
        %v1158 = vmul.f32 %v1152, %v1156
        %v1159 = vlaneseq
        %v1160 = vshrl.u32 %v1159, 7
        %v1161 = vsub.s32 7, %v1160
        %v1162 = vrot.slane %v455, %v1161
        %v1163 = vadd.f32 %v1157, %v1162
        %v1164 = vadd.f32 %v1158, %v1162
        %v1165 = vpack.c.bf16 %v1163, %v1163
        %v1166 = vpack.c.bf16 %v1164, %v1164
        %v1167 = vld [vmem:[%s432] sm:$0xf]
        %v1168 = vld [vmem:[%s432 + $0x4] sm:$0xf]
        %v1169 = vld [vmem:[%s432 + $0x8] sm:$0xf]
        %v1170 = vld [vmem:[%s432 + $0xc] sm:$0xf]
        %v1171 = vld [vmem:[%s417] sm:$0x1]
        %v1173 = vlaneseq
        %v1174 = vshrl.u32 %v1173, 7
        %v1175 = vsub.s32 0, %v1174
        %v1176 = vrot.slane %v1171, %v1175
        %v1180 = vunpack.c.l.b16 %v1165
        %v1181 = vunpack.c.l.b16 %v1166
        %v1182 = vpack.c.b16 %v1181, %v1180
        %v1187 = vunpack.c.l.b16 %v1167
        %v1188 = vunpack.c.l.b16 %v1168
        %v1189 = vunpack.c.l.b16 %v1169
        %v1190 = vunpack.c.l.b16 %v1170
        %v1191 = vpack.c.b16 %v1188, %v1187
        %v1192 = vpack.c.b16 %v1190, %v1189
        %v1196 = vsel %vm452, %v1182, 0
        %1198 = vmatprep.subr.bf16.mxu0 0
        %1199 = vmatpush1.bf16.msra.mxu0 %v1191
        %1200 = vmatprep.subr.bf16.mxu0 0
        %1201 = vmatpush1.bf16.msra.mxu0 %v1192
        %1202 = vmatprep.subr.bf16.mxu0 0
        %1203 = vmatpush1.bf16.msra.mxu0 0
        %1204 = vmatprep.subr.bf16.mxu0 0
        %1205 = vmatpush1.bf16.msra.mxu0 0
        %1206 = vmatprep.subr.bf16.mxu0 0
        %1207 = vmatpush1.bf16.msra.mxu0 0
        %1208 = vmatprep.subr.bf16.mxu0 0
        %1209 = vmatpush1.bf16.msra.mxu0 0
        %1210 = vmatprep.subr.bf16.mxu0 0
        %1211 = vmatpush1.bf16.msra.mxu0 0
        %1212 = vmatprep.subr.bf16.mxu0 0
        %1213 = vmatpush1.bf16.msra.mxu0 0
        %1214 = vmatprep.subr.bf16.mxu0 0
        %1215 = vmatpush1.bf16.msra.mxu0 0
        %1216 = vmatprep.subr.bf16.mxu0 0
        %1217 = vmatpush1.bf16.msra.mxu0 0
        %1218 = vmatprep.subr.bf16.mxu0 0
        %1219 = vmatpush1.bf16.msra.mxu0 0
        %1220 = vmatprep.subr.bf16.mxu0 0
        %1221 = vmatpush1.bf16.msra.mxu0 0
        %1222 = vmatprep.subr.bf16.mxu0 0
        %1223 = vmatpush1.bf16.msra.mxu0 0
        %1224 = vmatprep.subr.bf16.mxu0 0
        %1225 = vmatpush1.bf16.msra.mxu0 0
        %1226 = vmatprep.subr.bf16.mxu0 0
        %1227 = vmatpush1.bf16.msra.mxu0 0
        %1228 = vmatprep.subr.bf16.mxu0 0
        %1229 = vmatpush1.bf16.msra.mxu0 0
        %1230 = vmatprep.mubr.bf16.mxu0 0
        %1231 = vmatmul.mubr.bf16.gmra.mrb[0].mxu0 %v1196
        %v1232 = vpop.f32.mrb[0].mxu0
        %v1233 = vadd.f32 %v1176, %v1232
        %v1234 = vpop.f32.mrb[0].mxu0
        %v1235 = vpop.f32.mrb[0].mxu0
        %v1236 = vadd.f32 %v1176, %v1235
        %v1237 = vpop.f32.mrb[0].mxu0
        %1238 = vdwg.mxu0
        %v1239 = vmul.f32 %v1233, %v1233
        %v1240 = vmul.f32 %v1236, %v1236
        %v1241 = vmul.f32 %v1233, %v1239
        %v1242 = vmul.f32 %v1236, %v1240
        %v1243 = vmul.f32 %v1241, 0.044715
        %v1244 = vmul.f32 %v1242, 0.044715
        %v1245 = vadd.f32 %v1233, %v1243
        %v1246 = vadd.f32 %v1236, %v1244
        %v1247 = vmul.f32 %v1245, 0.7978846
        %v1248 = vmul.f32 %v1246, 0.7978846
        %v1249 = vtanh.pop %v1247
        %v1250 = vtanh.pop %v1248
        %v1251 = vadd.f32 %v1249, 1.0
        %v1252 = vadd.f32 %v1250, 1.0
        %v1253 = vmul.f32 %v1251, 0.5
        %v1254 = vmul.f32 %v1252, 0.5
        %v1255 = vmul.f32 %v1233, %v1253
        %v1256 = vmul.f32 %v1236, %v1254
        %v1257 = vpack.c.bf16 %v1256, %v1255
        %v1258 = vld [vmem:[%s437] sm:$0xf]
        %v1259 = vld [vmem:[%s437 + $0x4] sm:$0xf]
        %v1260 = vld [vmem:[%s437 + $0x8] sm:$0xf]
        %v1261 = vld [vmem:[%s437 + $0xc] sm:$0xf]
        %v1262 = vld [vmem:[%s437 + $0x10] sm:$0xf]
        %v1263 = vld [vmem:[%s437 + $0x14] sm:$0xf]
        %v1264 = vld [vmem:[%s437 + $0x18] sm:$0xf]
        %v1265 = vld [vmem:[%s437 + $0x1c] sm:$0xf]
        %v1266 = vlaneseq
        %v1267 = vshrl.u32 %v1266, 7
        %v1268 = vsub.s32 0, %v1267
        %v1269 = vrot.slane %v456, %v1268
        %v1278 = vunpack.c.l.b16 %v1258
        %v1279 = vunpack.c.l.b16 %v1259
        %v1280 = vunpack.c.l.b16 %v1260
        %v1281 = vunpack.c.l.b16 %v1261
        %v1282 = vunpack.c.l.b16 %v1262
        %v1283 = vunpack.c.l.b16 %v1263
        %v1284 = vunpack.c.l.b16 %v1264
        %v1285 = vunpack.c.l.b16 %v1265
        %v1286 = vpack.c.b16 %v1279, %v1278
        %v1287 = vpack.c.b16 %v1281, %v1280
        %v1288 = vpack.c.b16 %v1283, %v1282
        %v1289 = vpack.c.b16 %v1285, %v1284
        %vm1294 = vcmask 523264
        %v1296 = vsel %vm1294, %v1257, 0
        %1298 = vmatprep.subr.bf16.mxu0 0
        %1299 = vmatpush1.bf16.msra.mxu0 %v1286
        %1300 = vmatprep.subr.bf16.mxu0 0
        %1301 = vmatpush1.bf16.msra.mxu0 %v1287
        %1302 = vmatprep.subr.bf16.mxu0 0
        %1303 = vmatpush1.bf16.msra.mxu0 %v1288
        %1304 = vmatprep.subr.bf16.mxu0 0
        %1305 = vmatpush1.bf16.msra.mxu0 %v1289
        %1306 = vmatprep.subr.bf16.mxu0 0
        %1307 = vmatpush1.bf16.msra.mxu0 0
        %1308 = vmatprep.subr.bf16.mxu0 0
        %1309 = vmatpush1.bf16.msra.mxu0 0
        %1310 = vmatprep.subr.bf16.mxu0 0
        %1311 = vmatpush1.bf16.msra.mxu0 0
        %1312 = vmatprep.subr.bf16.mxu0 0
        %1313 = vmatpush1.bf16.msra.mxu0 0
        %1314 = vmatprep.subr.bf16.mxu0 0
        %1315 = vmatpush1.bf16.msra.mxu0 0
        %1316 = vmatprep.subr.bf16.mxu0 0
        %1317 = vmatpush1.bf16.msra.mxu0 0
        %1318 = vmatprep.subr.bf16.mxu0 0
        %1319 = vmatpush1.bf16.msra.mxu0 0
        %1320 = vmatprep.subr.bf16.mxu0 0
        %1321 = vmatpush1.bf16.msra.mxu0 0
        %1322 = vmatprep.subr.bf16.mxu0 0
        %1323 = vmatpush1.bf16.msra.mxu0 0
        %1324 = vmatprep.subr.bf16.mxu0 0
        %1325 = vmatpush1.bf16.msra.mxu0 0
        %1326 = vmatprep.subr.bf16.mxu0 0
        %1327 = vmatpush1.bf16.msra.mxu0 0
        %1328 = vmatprep.subr.bf16.mxu0 0
        %1329 = vmatpush1.bf16.msra.mxu0 0
        %1330 = vmatprep.mubr.bf16.mxu0 0
        %1331 = vmatmul.mubr.bf16.gmra.mrb[0].mxu0 %v1296
        %v1332 = vpop.f32.mrb[0].mxu0
        %v1333 = vadd.f32 %v1269, %v1332
        %v1334 = vpop.f32.mrb[0].mxu0
        %v1335 = vpop.f32.mrb[0].mxu0
        %v1336 = vadd.f32 %v1269, %v1335
        %v1337 = vpop.f32.mrb[0].mxu0
        %1338 = vdwg.mxu0
        %v1339 = vadd.f32 %v1125, %v1333
        %v1340 = vadd.f32 %v1126, %v1336
        %1341 = vst.msk [vmem:[#allocation2] sm:$0xff] %vm452, %v1339
        %1342 = vst.msk [vmem:[#allocation2 + $0x8] sm:$0xff] %vm452, %v1340
        %p1343 = scmp.eq.s32.totalorder %s29, 3
        // Predicated region
        $region53: #{transformer_blocks_forward.1} parent=47 // pred_check
          %p1344 = pneg %p1343
        $region54: #{transformer_blocks_forward.1} parent=47 // pred_check_branch
          %1346 = sbr.rel (%p1344) target = $region56
        $region55: #{transformer_blocks_forward.1} parent=47 // pred_region
          %1347 = vst.msk [vmem:[#allocation3] sm:$0xff] %vm452, %v1339
          %1348 = vst.msk [vmem:[#allocation3 + $0x8] sm:$0xff] %vm452, %v1340
        $region56: #{transformer_blocks_forward.1} parent=47 // pred_fallthru
          _
        %s1349 = sand.u32 %s254, 1
        %s1350 = scalar_lea.sflag [#allocation6], %s1349
        %s1351 = sand.u32 %s254, 1
        %s1352 = smul.addr %s1351, 16
        %s1353 = scalar_lea.vmem [#allocation5], %s1352
        // Predicated region
        $region57: #{transformer_blocks_forward.1} parent=47 // pred_check
          %p1354 = pneg %p236
        $region58: #{transformer_blocks_forward.1} parent=47 // pred_check_branch
          %1356 = sbr.rel (%p1354) target = $region60
        $region59: #{transformer_blocks_forward.1} parent=47 // pred_region
          %s1357 = smul.u32 2, %s28
          %s1359 = ssub.s32 256, 256
          %1360 = vsyncadd [#allocation4], %s1359
          %s1361 = smul.addr %s1357, 128
          %s1362 = scalar_lea.hbm %s7, %s1361
          %s1363 = sshll.u32 [#allocation3], 4
          %s1364 = int_to_ptr.vmem [resolvable:$true] %s1363
          %1369 = dma.vmem_to_hbm [thread:$0]  %s1364, 256, %s1362, [#allocation4], 128, 128, 8
        $region60: #{transformer_blocks_forward.1} parent=47 // pred_fallthru
          _
        // Predicated region
        $region61: #{transformer_blocks_forward.1} parent=47 // pred_check
          %p1370 = pneg %p264
        $region62: #{transformer_blocks_forward.1} parent=47 // pred_check_branch
          %1372 = sbr.rel (%p1370) target = $region64
        $region63: #{transformer_blocks_forward.1} parent=47 // pred_region
          %s1373 = smul.u32 2, %s28
          %s1375 = ssub.s32 256, 256
          %1376 = vsyncadd %s1350, %s1375
          %s1377 = smul.addr %s29, 2
          %s1378 = sadd.s32 %s1373, %s1377
          %s1379 = smul.addr %s1378, 128
          %s1380 = scalar_lea.hbm %s8, %s1379
          %s1381 = sshll.u32 %s1353, 4
          %s1382 = int_to_ptr.vmem [resolvable:$true] %s1381
          %1387 = dma.vmem_to_hbm [thread:$0]  %s1382, 256, %s1380, %s1350, 128, 128, 8
        $region64: #{transformer_blocks_forward.1} parent=47 // pred_fallthru
          _
        // Predicated region
        $region65: #{transformer_blocks_forward.1} parent=47 // pred_check
          %p1388 = pneg %p236
        $region66: #{transformer_blocks_forward.1} parent=47 // pred_check_branch
          %1390 = sbr.rel (%p1388) target = $region68
        $region67: #{transformer_blocks_forward.1} parent=47 // pred_region
          %1391 = dma.done [#allocation4], 256
        $region68: #{transformer_blocks_forward.1} parent=47 // pred_fallthru
          _
      $region48: #{transformer_blocks_forward.1} parent=5 // pred_fallthru
        _
      %p1392 = scmp.le.s32.totalorder 2, %s19
      // Predicated region
      $region69: #{transformer_blocks_forward.1} parent=5 // pred_check
        %p1393 = pneg %p1392
      $region70: #{transformer_blocks_forward.1} parent=5 // pred_check_branch
        %1395 = sbr.rel (%p1393) target = $region72
      $region71: #{transformer_blocks_forward.1} parent=5 // pred_region
        %s1396 = ssub.s32 %s19, 2
        // Predicated region
        $region73: #{transformer_blocks_forward.1} parent=71 // pred_check
          %p1397 = pneg %p270
        $region74: #{transformer_blocks_forward.1} parent=71 // pred_check_branch
          %1399 = sbr.rel (%p1397) target = $region76
        $region75: #{transformer_blocks_forward.1} parent=71 // pred_region
          %s1400 = sand.u32 %s255, 1
          %s1401 = scalar_lea.sflag [#allocation6], %s1400
          %s1402 = sand.u32 %s255, 1
          %s1403 = smul.addr %s1402, 16
          %s1404 = scalar_lea.vmem [#allocation5], %s1403
          %1405 = dma.done %s1401, 256
        $region76: #{transformer_blocks_forward.1} parent=71 // pred_fallthru
          _
      $region72: #{transformer_blocks_forward.1} parent=5 // pred_fallthru
        _
    $region6: #{transformer_blocks_forward.1} parent=1 // loop_footer
      %s23 = sadd.s32 1, %s19
    $region7: #{transformer_blocks_forward.1} parent=1 // loop_footer_branch
      %18 = sbr.rel target = $region3
    $region8: #{transformer_blocks_forward.1} parent=1 // loop_exit
      _
    %1406 = vsyncpa [#allocation4], 1
    %s1407 = scalar_lea.sflag [#allocation4], 1
    %1408 = vsyncpa %s1407, 1
    %1409 = vsyncpa [#allocation6], 1
    %s1410 = scalar_lea.sflag [#allocation6], 1
    %1411 = vsyncpa %s1410, 1

</llo_original>
